<compile_context>
chip_gen: v5e
topology: v5e:2x2
jax: 0.10.0
libtpu: 0.0.40
codegen_flags: <defaults>
</compile_context>

<pallas_src>
import jax
import jax.numpy as jnp
import numpy as np
from jax import lax
from jax.experimental import pallas as pl
from jax.experimental.pallas import tpu as pltpu


def _round_up(x, m):
    return (x + m - 1) // m * m


def _lstm_chunk_kernel(pre_ref, w_hh_ref, out_ref, hn_ref, h_sc, c_sc):
    """One grid step == one chunk of T_chunk timesteps.

    pre_ref : (T_chunk, Bp, 4*Hp) f32   precomputed x @ W_ih^T + b (gate-blocked)
    w_hh_ref: (Hp, 4*Hp)                recurrent weights (VMEM-resident)
    out_ref : (T_chunk, Bp, Hp)         per-step hidden states for this chunk
    hn_ref  : (1, Bp, Hp)               final hidden state (constant-index block)
    h_sc/c_sc: (Bp, Hp) f32             state carried across chunks
    """
    chunk = pl.program_id(0)
    t_chunk = pre_ref.shape[0]
    hp = h_sc.shape[-1]

    # h0 = c0 = 0 (PyTorch default) on the first chunk.
    @pl.when(chunk == 0)
    def _():
        h_sc[...] = jnp.zeros_like(h_sc)
        c_sc[...] = jnp.zeros_like(c_sc)

    w_hh = w_hh_ref[...]  # hoisted; resident across the whole grid

    def step(tt, carry):
        h, c = carry
        # Single small matmul on the sequential critical path.
        gates = pre_ref[tt] + jnp.dot(
            h.astype(w_hh.dtype), w_hh, preferred_element_type=jnp.float32)
        # Gate-blocked, 128-lane-aligned slices: free views, no lane shuffles.
        i_g = jax.nn.sigmoid(gates[:, 0 * hp:1 * hp])
        f_g = jax.nn.sigmoid(gates[:, 1 * hp:2 * hp])
        g_g = jnp.tanh(gates[:, 2 * hp:3 * hp])
        o_g = jax.nn.sigmoid(gates[:, 3 * hp:4 * hp])
        c_new = f_g * c + i_g * g_g
        h_new = o_g * jnp.tanh(c_new)
        out_ref[tt] = h_new.astype(out_ref.dtype)   # buffered in VMEM block
        return h_new, c_new

    h0 = h_sc[...]
    c0 = c_sc[...]
    h_f, c_f = lax.fori_loop(0, t_chunk, step, (h0, c0),
                             unroll=min(t_chunk, 8))

    # Scratch touched only at chunk boundaries.
    h_sc[...] = h_f
    c_sc[...] = c_f
    # Write h_n every chunk (cheap: block stays VMEM-resident; last write wins,
    # robust even if the time axis is ever re-tiled).
    hn_ref[0] = h_f.astype(hn_ref.dtype)


def _block_weights(w_ih, w_hh, b_ih, b_hh, H, Hp):
    """PyTorch-layout weights -> gate-blocked, H-padded, matmul-ready layout."""
    four_h, I = w_ih.shape
    # W_ih: (4H, I) -> (I, 4*Hp), columns blocked as [i|f|g|o] each width Hp.
    w_ih_b = w_ih.reshape(4, H, I)
    w_ih_b = jnp.pad(w_ih_b, ((0, 0), (0, Hp - H), (0, 0)))
    w_ih_b = jnp.transpose(w_ih_b, (2, 0, 1)).reshape(I, 4 * Hp)

    # W_hh: (4H, H) -> (Hp, 4*Hp); pad both h_out and h_in with zeros.
    w_hh_b = w_hh.reshape(4, H, H)                     # (gate, h_out, h_in)
    w_hh_b = jnp.pad(w_hh_b, ((0, 0), (0, Hp - H), (0, Hp - H)))
    w_hh_b = jnp.transpose(w_hh_b, (2, 0, 1)).reshape(Hp, 4 * Hp)

    # Fused bias, gate-blocked and H-padded.
    b = (b_ih + b_hh).reshape(4, H)
    b = jnp.pad(b, ((0, 0), (0, Hp - H))).reshape(4 * Hp)
    return w_ih_b, w_hh_b, b


@jax.jit
def lstm_forward(x, w_ih, w_hh, b_ih, b_hh):
    """x: [seq, batch, input_size]; PyTorch-layout weights:
       w_ih: [4H, I], w_hh: [4H, H], b_ih/b_hh: [4H].
       Returns (output [S,B,H], h_n [1,B,H])."""
    S, B, I = x.shape
    H = w_hh.shape[1]
    Hp = _round_up(max(H, 128), 128)   # lane-dense hidden
    Bp = _round_up(max(B, 8), 8)       # sublane-aligned batch

    w_ih_b, w_hh_b, b = _block_weights(w_ih, w_hh, b_ih, b_hh, H, Hp)

    # ---- Hoisted input projection for ALL timesteps (one MXU-friendly matmul).
    pre = jnp.dot(x.reshape(S * B, I), w_ih_b.astype(x.dtype),
                  preferred_element_type=jnp.float32)
    pre = pre.reshape(S, B, 4 * Hp) + b.astype(jnp.float32)[None, None, :]
    pre = jnp.pad(pre, ((0, 0), (0, Bp - B), (0, 0)))       # (S, Bp, 4Hp) f32

    # ---- Time chunking: largest divisor of S not exceeding 64.
    t_chunk = min(64, S)
    while S % t_chunk != 0:
        t_chunk -= 1
    n_chunks = S // t_chunk

    out_shapes = (
        jax.ShapeDtypeStruct((S, Bp, Hp), x.dtype),   # per-step hidden states
        jax.ShapeDtypeStruct((1, Bp, Hp), x.dtype),   # h_n
    )

    grid_spec = pltpu.PrefetchScalarGridSpec(
        num_scalar_prefetch=0,
        grid=(n_chunks,),
        in_specs=[
            pl.BlockSpec((t_chunk, Bp, 4 * Hp), lambda c: (c, 0, 0)),  # pre-gates
            pl.BlockSpec((Hp, 4 * Hp), lambda c: (0, 0)),              # W_hh resident
        ],
        out_specs=[
            pl.BlockSpec((t_chunk, Bp, Hp), lambda c: (c, 0, 0)),      # output chunk
            pl.BlockSpec((1, Bp, Hp), lambda c: (0, 0, 0)),            # h_n resident
        ],
        scratch_shapes=[
            pltpu.VMEM((Bp, Hp), jnp.float32),   # h carry
            pltpu.VMEM((Bp, Hp), jnp.float32),   # c carry
        ],
    )

    # Explicit VMEM budget (v7x: 64 MiB physical, 32 MiB scoped default).
    itemsize = jnp.dtype(x.dtype).itemsize
    w_bytes = Hp * 4 * Hp * jnp.dtype(w_hh_b.dtype).itemsize
    blk_bytes = (2 * t_chunk * Bp * 4 * Hp * 4        # pre-gates (double-buffered)
                 + 2 * t_chunk * Bp * Hp * itemsize   # output   (double-buffered)
                 + 2 * Bp * Hp * itemsize             # h_n
                 + 2 * Bp * Hp * 4)                   # h/c scratch
    vmem_limit = int(min(max(2 * (w_bytes + blk_bytes), 4 << 20), 64 << 20))

    out_p, hn_p = pl.pallas_call(
        _lstm_chunk_kernel,
        out_shape=out_shapes,
        grid_spec=grid_spec,
        compiler_params=pltpu.CompilerParams(
            dimension_semantics=("arbitrary",),   # time is sequential
            vmem_limit_bytes=vmem_limit,
        ),
    )(pre, w_hh_b)

    # Strip batch/hidden padding.
    return out_p[:, :B, :H], hn_p[:, :B, :H]


def lstm_reference(x, w_ih, w_hh, b_ih, b_hh):
    """Pure-JAX reference matching PyTorch nn.LSTM (1 layer, unidirectional)."""
    S, B, I = x.shape
    H = w_hh.shape[1]
    w_ih_t = w_ih.T
    w_hh_t = w_hh.T
    b = (b_ih + b_hh)[None, :]

    def step(carry, x_t):
        h, c = carry
        gates = x_t @ w_ih_t + h @ w_hh_t + b
        i = jax.nn.sigmoid(gates[:, 0 * H:1 * H])
        f = jax.nn.sigmoid(gates[:, 1 * H:2 * H])
        g = jnp.tanh(gates[:, 2 * H:3 * H])
        o = jax.nn.sigmoid(gates[:, 3 * H:4 * H])
        c_new = f * c + i * g
        h_new = o * jnp.tanh(c_new)
        return (h_new, c_new), h_new

    h0 = jnp.zeros((B, H), jnp.float32)
    c0 = jnp.zeros((B, H), jnp.float32)
    (h_T, _), outs = lax.scan(step, (h0, c0), x)
    return outs, h_T[None]


if __name__ == "__main__":
    # Shapes consistent with the module's forward:
    #   input  : [seq_len, batch, input_size]
    #   output : [seq_len, batch, hidden_size]
    #   h_n    : [num_layers*num_directions, batch, hidden_size] = [1, batch, hidden]
    SEQ, BATCH, INPUT, HIDDEN = 8, 2, 16, 32

    key = jax.random.PRNGKey(0)
    kx, k1, k2, k3, k4 = jax.random.split(key, 5)

    x = jax.random.normal(kx, (SEQ, BATCH, INPUT), dtype=jnp.float32)

    # Deterministic synthetic parameters (PyTorch-style shapes, gate order i,f,g,o).
    scale = 1.0 / jnp.sqrt(jnp.float32(HIDDEN))
    w_ih = jax.random.uniform(k1, (4 * HIDDEN, INPUT), jnp.float32, -scale, scale)
    w_hh = jax.random.uniform(k2, (4 * HIDDEN, HIDDEN), jnp.float32, -scale, scale)
    b_ih = jax.random.uniform(k3, (4 * HIDDEN,), jnp.float32, -scale, scale)
    b_hh = jax.random.uniform(k4, (4 * HIDDEN,), jnp.float32, -scale, scale)

    # Note: dropout=0.5 in the module is a no-op for num_layers=1 (PyTorch only
    # applies inter-layer dropout), so it is intentionally not implemented.

    out, h_n = lstm_forward(x, w_ih, w_hh, b_ih, b_hh)
    out, h_n = jax.block_until_ready(out), jax.block_until_ready(h_n)

    ref_out, ref_hn = lstm_reference(x, w_ih, w_hh, b_ih, b_hh)
    np.testing.assert_allclose(np.asarray(out), np.asarray(ref_out), atol=1e-5, rtol=1e-5)
    np.testing.assert_allclose(np.asarray(h_n), np.asarray(ref_hn), atol=1e-5, rtol=1e-5)

    assert out.shape == (SEQ, BATCH, HIDDEN)
    assert h_n.shape == (1, BATCH, HIDDEN)
    print("KERNEL_OK")
</pallas_src>

<mosaic_0001>
module attributes {stable_mosaic.version = 11 : i64} {
  func.func @_lstm_chunk_kernel(%arg0: i32, %arg1: memref<8x8x512xf32, #tpu.memory_space<vmem>>, %arg2: memref<128x512xf32, #tpu.memory_space<vmem>>, %arg3: memref<8x8x128xf32, #tpu.memory_space<vmem>>, %arg4: memref<1x8x128xf32, #tpu.memory_space<vmem>>, %arg5: memref<8x128xf32, #tpu.memory_space<vmem>>, %arg6: memref<8x128xf32, #tpu.memory_space<vmem>>) attributes {dimension_semantics = [#tpu.dimension_semantics<arbitrary>], iteration_bounds = array<i64: 1>, scalar_prefetch = 0 : i64, scratch_operands = 2 : i64, tpu.core_type = #tpu.core_type<tc>, window_params = [{transform_indices = @transform_0, window_bounds = array<i64: 8, 8, 512>}, {pipeline_mode = #tpu.pipeline_mode<synchronous>, transform_indices = @transform_1, window_bounds = array<i64: 128, 512>}, {transform_indices = @transform_2, window_bounds = array<i64: 8, 8, 128>}, {pipeline_mode = #tpu.pipeline_mode<synchronous>, transform_indices = @transform_3, window_bounds = array<i64: 1, 8, 128>}]} {
    %c0_i32 = arith.constant 0 : i32
    %0 = arith.cmpi eq, %arg0, %c0_i32 : i32
    %1 = arith.extui %0 : i1 to i32
    %c0_i32_0 = arith.constant 0 : i32
    %2 = arith.cmpi ne, %1, %c0_i32_0 : i32
    scf.if %2 {
      %cst_77 = arith.constant 0.000000e+00 : f32
      %283 = vector.broadcast %cst_77 : f32 to vector<8x128xf32>
      %c0_78 = arith.constant 0 : index
      %c0_79 = arith.constant 0 : index
      %284 = vector.load %arg5[%c0_78, %c0_79] : memref<8x128xf32, #tpu.memory_space<vmem>>, vector<8x128xf32>
      tpu.vector_store %arg5[%c0_78, %c0_79], %283 {strides = array<i32>} : memref<8x128xf32, #tpu.memory_space<vmem>>, vector<8x128xf32>,
      %cst_80 = arith.constant 0.000000e+00 : f32
      %285 = vector.broadcast %cst_80 : f32 to vector<8x128xf32>
      %c0_81 = arith.constant 0 : index
      %c0_82 = arith.constant 0 : index
      %286 = vector.load %arg6[%c0_81, %c0_82] : memref<8x128xf32, #tpu.memory_space<vmem>>, vector<8x128xf32>
      tpu.vector_store %arg6[%c0_81, %c0_82], %285 {strides = array<i32>} : memref<8x128xf32, #tpu.memory_space<vmem>>, vector<8x128xf32>,
    } else {
    }
    %c0 = arith.constant 0 : index
    %c0_1 = arith.constant 0 : index
    %3 = vector.load %arg2[%c0, %c0_1] : memref<128x512xf32, #tpu.memory_space<vmem>>, vector<128x512xf32>
    %c0_2 = arith.constant 0 : index
    %c0_3 = arith.constant 0 : index
    %4 = vector.load %arg5[%c0_2, %c0_3] : memref<8x128xf32, #tpu.memory_space<vmem>>, vector<8x128xf32>
    %c0_4 = arith.constant 0 : index
    %c0_5 = arith.constant 0 : index
    %5 = vector.load %arg6[%c0_4, %c0_5] : memref<8x128xf32, #tpu.memory_space<vmem>>, vector<8x128xf32>
    %c0_i32_6 = arith.constant 0 : i32
    %6 = arith.index_cast %c0_i32_6 : i32 to index
    %c0_7 = arith.constant 0 : index
    %c0_8 = arith.constant 0 : index
    %7 = vector.load %arg1[%6, %c0_7, %c0_8] : memref<8x8x512xf32, #tpu.memory_space<vmem>>, vector<1x8x512xf32>
    %8 = vector.shape_cast %7 : vector<1x8x512xf32> to vector<8x512xf32>
    %cst = arith.constant dense<0.000000e+00> : vector<8x512xf32>
    %9 = tpu.matmul %4, %3, %cst {dimension_numbers = #tpu.dot_dimension_numbers<[1], [0], [0], [1], [0, 0, 1, 1], [], []>} : vector<8x128xf32>, vector<128x512xf32>, vector<8x512xf32> -> vector<8x512xf32>
    %10 = arith.addf %8, %9 : vector<8x512xf32>
    %11 = vector.extract_strided_slice %10 {offsets = [0, 0], sizes = [8, 128], strides = [1, 1]} : vector<8x512xf32> to vector<8x128xf32>
    %12 = arith.negf %11 : vector<8x128xf32>
    %13 = math.exp %12 : vector<8x128xf32>
    %cst_9 = arith.constant 1.000000e+00 : f32
    %14 = vector.broadcast %cst_9 : f32 to vector<8x128xf32>
    %15 = arith.addf %14, %13 : vector<8x128xf32>
    %16 = arith.divf %14, %15 : vector<8x128xf32>
    %17 = vector.extract_strided_slice %10 {offsets = [0, 128], sizes = [8, 128], strides = [1, 1]} : vector<8x512xf32> to vector<8x128xf32>
    %18 = arith.negf %17 : vector<8x128xf32>
    %19 = math.exp %18 : vector<8x128xf32>
    %cst_10 = arith.constant 1.000000e+00 : f32
    %20 = vector.broadcast %cst_10 : f32 to vector<8x128xf32>
    %21 = arith.addf %20, %19 : vector<8x128xf32>
    %22 = arith.divf %20, %21 : vector<8x128xf32>
    %23 = vector.extract_strided_slice %10 {offsets = [0, 256], sizes = [8, 128], strides = [1, 1]} : vector<8x512xf32> to vector<8x128xf32>
    %24 = math.tanh %23 : vector<8x128xf32>
    %25 = vector.extract_strided_slice %10 {offsets = [0, 384], sizes = [8, 128], strides = [1, 1]} : vector<8x512xf32> to vector<8x128xf32>
    %26 = arith.negf %25 : vector<8x128xf32>
    %27 = math.exp %26 : vector<8x128xf32>
    %cst_11 = arith.constant 1.000000e+00 : f32
    %28 = vector.broadcast %cst_11 : f32 to vector<8x128xf32>
    %29 = arith.addf %28, %27 : vector<8x128xf32>
    %30 = arith.divf %28, %29 : vector<8x128xf32>
    %31 = arith.mulf %22, %5 : vector<8x128xf32>
    %32 = arith.mulf %16, %24 : vector<8x128xf32>
    %33 = arith.addf %31, %32 : vector<8x128xf32>
    %34 = math.tanh %33 : vector<8x128xf32>
    %35 = arith.mulf %30, %34 : vector<8x128xf32>
    %36 = arith.index_cast %c0_i32_6 : i32 to index
    %c0_12 = arith.constant 0 : index
    %c0_13 = arith.constant 0 : index
    %37 = vector.load %arg3[%36, %c0_12, %c0_13] : memref<8x8x128xf32, #tpu.memory_space<vmem>>, vector<1x8x128xf32>
    %38 = vector.shape_cast %37 : vector<1x8x128xf32> to vector<8x128xf32>
    %39 = vector.shape_cast %35 : vector<8x128xf32> to vector<1x8x128xf32>
    tpu.vector_store %arg3[%36, %c0_12, %c0_13], %39 {strides = array<i32>} : memref<8x8x128xf32, #tpu.memory_space<vmem>>, vector<1x8x128xf32>,
    %c1_i32 = arith.constant 1 : i32
    %40 = arith.index_cast %c1_i32 : i32 to index
    %c0_14 = arith.constant 0 : index
    %c0_15 = arith.constant 0 : index
    %41 = vector.load %arg1[%40, %c0_14, %c0_15] : memref<8x8x512xf32, #tpu.memory_space<vmem>>, vector<1x8x512xf32>
    %42 = vector.shape_cast %41 : vector<1x8x512xf32> to vector<8x512xf32>
    %cst_16 = arith.constant dense<0.000000e+00> : vector<8x512xf32>
    %43 = tpu.matmul %35, %3, %cst_16 {dimension_numbers = #tpu.dot_dimension_numbers<[1], [0], [0], [1], [0, 0, 1, 1], [], []>} : vector<8x128xf32>, vector<128x512xf32>, vector<8x512xf32> -> vector<8x512xf32>
    %44 = arith.addf %42, %43 : vector<8x512xf32>
    %45 = vector.extract_strided_slice %44 {offsets = [0, 0], sizes = [8, 128], strides = [1, 1]} : vector<8x512xf32> to vector<8x128xf32>
    %46 = arith.negf %45 : vector<8x128xf32>
    %47 = math.exp %46 : vector<8x128xf32>
    %cst_17 = arith.constant 1.000000e+00 : f32
    %48 = vector.broadcast %cst_17 : f32 to vector<8x128xf32>
    %49 = arith.addf %48, %47 : vector<8x128xf32>
    %50 = arith.divf %48, %49 : vector<8x128xf32>
    %51 = vector.extract_strided_slice %44 {offsets = [0, 128], sizes = [8, 128], strides = [1, 1]} : vector<8x512xf32> to vector<8x128xf32>
    %52 = arith.negf %51 : vector<8x128xf32>
    %53 = math.exp %52 : vector<8x128xf32>
    %cst_18 = arith.constant 1.000000e+00 : f32
    %54 = vector.broadcast %cst_18 : f32 to vector<8x128xf32>
    %55 = arith.addf %54, %53 : vector<8x128xf32>
    %56 = arith.divf %54, %55 : vector<8x128xf32>
    %57 = vector.extract_strided_slice %44 {offsets = [0, 256], sizes = [8, 128], strides = [1, 1]} : vector<8x512xf32> to vector<8x128xf32>
    %58 = math.tanh %57 : vector<8x128xf32>
    %59 = vector.extract_strided_slice %44 {offsets = [0, 384], sizes = [8, 128], strides = [1, 1]} : vector<8x512xf32> to vector<8x128xf32>
    %60 = arith.negf %59 : vector<8x128xf32>
    %61 = math.exp %60 : vector<8x128xf32>
    %cst_19 = arith.constant 1.000000e+00 : f32
    %62 = vector.broadcast %cst_19 : f32 to vector<8x128xf32>
    %63 = arith.addf %62, %61 : vector<8x128xf32>
    %64 = arith.divf %62, %63 : vector<8x128xf32>
    %65 = arith.mulf %56, %33 : vector<8x128xf32>
    %66 = arith.mulf %50, %58 : vector<8x128xf32>
    %67 = arith.addf %65, %66 : vector<8x128xf32>
    %68 = math.tanh %67 : vector<8x128xf32>
    %69 = arith.mulf %64, %68 : vector<8x128xf32>
    %70 = arith.index_cast %c1_i32 : i32 to index
    %c0_20 = arith.constant 0 : index
    %c0_21 = arith.constant 0 : index
    %71 = vector.load %arg3[%70, %c0_20, %c0_21] : memref<8x8x128xf32, #tpu.memory_space<vmem>>, vector<1x8x128xf32>
    %72 = vector.shape_cast %71 : vector<1x8x128xf32> to vector<8x128xf32>
    %73 = vector.shape_cast %69 : vector<8x128xf32> to vector<1x8x128xf32>
    tpu.vector_store %arg3[%70, %c0_20, %c0_21], %73 {strides = array<i32>} : memref<8x8x128xf32, #tpu.memory_space<vmem>>, vector<1x8x128xf32>,
    %c2_i32 = arith.constant 2 : i32
    %74 = arith.index_cast %c2_i32 : i32 to index
    %c0_22 = arith.constant 0 : index
    %c0_23 = arith.constant 0 : index
    %75 = vector.load %arg1[%74, %c0_22, %c0_23] : memref<8x8x512xf32, #tpu.memory_space<vmem>>, vector<1x8x512xf32>
    %76 = vector.shape_cast %75 : vector<1x8x512xf32> to vector<8x512xf32>
    %cst_24 = arith.constant dense<0.000000e+00> : vector<8x512xf32>
    %77 = tpu.matmul %69, %3, %cst_24 {dimension_numbers = #tpu.dot_dimension_numbers<[1], [0], [0], [1], [0, 0, 1, 1], [], []>} : vector<8x128xf32>, vector<128x512xf32>, vector<8x512xf32> -> vector<8x512xf32>
    %78 = arith.addf %76, %77 : vector<8x512xf32>
    %79 = vector.extract_strided_slice %78 {offsets = [0, 0], sizes = [8, 128], strides = [1, 1]} : vector<8x512xf32> to vector<8x128xf32>
    %80 = arith.negf %79 : vector<8x128xf32>
    %81 = math.exp %80 : vector<8x128xf32>
    %cst_25 = arith.constant 1.000000e+00 : f32
    %82 = vector.broadcast %cst_25 : f32 to vector<8x128xf32>
    %83 = arith.addf %82, %81 : vector<8x128xf32>
    %84 = arith.divf %82, %83 : vector<8x128xf32>
    %85 = vector.extract_strided_slice %78 {offsets = [0, 128], sizes = [8, 128], strides = [1, 1]} : vector<8x512xf32> to vector<8x128xf32>
    %86 = arith.negf %85 : vector<8x128xf32>
    %87 = math.exp %86 : vector<8x128xf32>
    %cst_26 = arith.constant 1.000000e+00 : f32
    %88 = vector.broadcast %cst_26 : f32 to vector<8x128xf32>
    %89 = arith.addf %88, %87 : vector<8x128xf32>
    %90 = arith.divf %88, %89 : vector<8x128xf32>
    %91 = vector.extract_strided_slice %78 {offsets = [0, 256], sizes = [8, 128], strides = [1, 1]} : vector<8x512xf32> to vector<8x128xf32>
    %92 = math.tanh %91 : vector<8x128xf32>
    %93 = vector.extract_strided_slice %78 {offsets = [0, 384], sizes = [8, 128], strides = [1, 1]} : vector<8x512xf32> to vector<8x128xf32>
    %94 = arith.negf %93 : vector<8x128xf32>
    %95 = math.exp %94 : vector<8x128xf32>
    %cst_27 = arith.constant 1.000000e+00 : f32
    %96 = vector.broadcast %cst_27 : f32 to vector<8x128xf32>
    %97 = arith.addf %96, %95 : vector<8x128xf32>
    %98 = arith.divf %96, %97 : vector<8x128xf32>
    %99 = arith.mulf %90, %67 : vector<8x128xf32>
    %100 = arith.mulf %84, %92 : vector<8x128xf32>
    %101 = arith.addf %99, %100 : vector<8x128xf32>
    %102 = math.tanh %101 : vector<8x128xf32>
    %103 = arith.mulf %98, %102 : vector<8x128xf32>
    %104 = arith.index_cast %c2_i32 : i32 to index
    %c0_28 = arith.constant 0 : index
    %c0_29 = arith.constant 0 : index
    %105 = vector.load %arg3[%104, %c0_28, %c0_29] : memref<8x8x128xf32, #tpu.memory_space<vmem>>, vector<1x8x128xf32>
    %106 = vector.shape_cast %105 : vector<1x8x128xf32> to vector<8x128xf32>
    %107 = vector.shape_cast %103 : vector<8x128xf32> to vector<1x8x128xf32>
    tpu.vector_store %arg3[%104, %c0_28, %c0_29], %107 {strides = array<i32>} : memref<8x8x128xf32, #tpu.memory_space<vmem>>, vector<1x8x128xf32>,
    %c3_i32 = arith.constant 3 : i32
    %108 = arith.index_cast %c3_i32 : i32 to index
    %c0_30 = arith.constant 0 : index
    %c0_31 = arith.constant 0 : index
    %109 = vector.load %arg1[%108, %c0_30, %c0_31] : memref<8x8x512xf32, #tpu.memory_space<vmem>>, vector<1x8x512xf32>
    %110 = vector.shape_cast %109 : vector<1x8x512xf32> to vector<8x512xf32>
    %cst_32 = arith.constant dense<0.000000e+00> : vector<8x512xf32>
    %111 = tpu.matmul %103, %3, %cst_32 {dimension_numbers = #tpu.dot_dimension_numbers<[1], [0], [0], [1], [0, 0, 1, 1], [], []>} : vector<8x128xf32>, vector<128x512xf32>, vector<8x512xf32> -> vector<8x512xf32>
    %112 = arith.addf %110, %111 : vector<8x512xf32>
    %113 = vector.extract_strided_slice %112 {offsets = [0, 0], sizes = [8, 128], strides = [1, 1]} : vector<8x512xf32> to vector<8x128xf32>
    %114 = arith.negf %113 : vector<8x128xf32>
    %115 = math.exp %114 : vector<8x128xf32>
    %cst_33 = arith.constant 1.000000e+00 : f32
    %116 = vector.broadcast %cst_33 : f32 to vector<8x128xf32>
    %117 = arith.addf %116, %115 : vector<8x128xf32>
    %118 = arith.divf %116, %117 : vector<8x128xf32>
    %119 = vector.extract_strided_slice %112 {offsets = [0, 128], sizes = [8, 128], strides = [1, 1]} : vector<8x512xf32> to vector<8x128xf32>
    %120 = arith.negf %119 : vector<8x128xf32>
    %121 = math.exp %120 : vector<8x128xf32>
    %cst_34 = arith.constant 1.000000e+00 : f32
    %122 = vector.broadcast %cst_34 : f32 to vector<8x128xf32>
    %123 = arith.addf %122, %121 : vector<8x128xf32>
    %124 = arith.divf %122, %123 : vector<8x128xf32>
    %125 = vector.extract_strided_slice %112 {offsets = [0, 256], sizes = [8, 128], strides = [1, 1]} : vector<8x512xf32> to vector<8x128xf32>
    %126 = math.tanh %125 : vector<8x128xf32>
    %127 = vector.extract_strided_slice %112 {offsets = [0, 384], sizes = [8, 128], strides = [1, 1]} : vector<8x512xf32> to vector<8x128xf32>
    %128 = arith.negf %127 : vector<8x128xf32>
    %129 = math.exp %128 : vector<8x128xf32>
    %cst_35 = arith.constant 1.000000e+00 : f32
    %130 = vector.broadcast %cst_35 : f32 to vector<8x128xf32>
    %131 = arith.addf %130, %129 : vector<8x128xf32>
    %132 = arith.divf %130, %131 : vector<8x128xf32>
    %133 = arith.mulf %124, %101 : vector<8x128xf32>
    %134 = arith.mulf %118, %126 : vector<8x128xf32>
    %135 = arith.addf %133, %134 : vector<8x128xf32>
    %136 = math.tanh %135 : vector<8x128xf32>
    %137 = arith.mulf %132, %136 : vector<8x128xf32>
    %138 = arith.index_cast %c3_i32 : i32 to index
    %c0_36 = arith.constant 0 : index
    %c0_37 = arith.constant 0 : index
    %139 = vector.load %arg3[%138, %c0_36, %c0_37] : memref<8x8x128xf32, #tpu.memory_space<vmem>>, vector<1x8x128xf32>
    %140 = vector.shape_cast %139 : vector<1x8x128xf32> to vector<8x128xf32>
    %141 = vector.shape_cast %137 : vector<8x128xf32> to vector<1x8x128xf32>
    tpu.vector_store %arg3[%138, %c0_36, %c0_37], %141 {strides = array<i32>} : memref<8x8x128xf32, #tpu.memory_space<vmem>>, vector<1x8x128xf32>,
    %c4_i32 = arith.constant 4 : i32
    %142 = arith.index_cast %c4_i32 : i32 to index
    %c0_38 = arith.constant 0 : index
    %c0_39 = arith.constant 0 : index
    %143 = vector.load %arg1[%142, %c0_38, %c0_39] : memref<8x8x512xf32, #tpu.memory_space<vmem>>, vector<1x8x512xf32>
    %144 = vector.shape_cast %143 : vector<1x8x512xf32> to vector<8x512xf32>
    %cst_40 = arith.constant dense<0.000000e+00> : vector<8x512xf32>
    %145 = tpu.matmul %137, %3, %cst_40 {dimension_numbers = #tpu.dot_dimension_numbers<[1], [0], [0], [1], [0, 0, 1, 1], [], []>} : vector<8x128xf32>, vector<128x512xf32>, vector<8x512xf32> -> vector<8x512xf32>
    %146 = arith.addf %144, %145 : vector<8x512xf32>
    %147 = vector.extract_strided_slice %146 {offsets = [0, 0], sizes = [8, 128], strides = [1, 1]} : vector<8x512xf32> to vector<8x128xf32>
    %148 = arith.negf %147 : vector<8x128xf32>
    %149 = math.exp %148 : vector<8x128xf32>
    %cst_41 = arith.constant 1.000000e+00 : f32
    %150 = vector.broadcast %cst_41 : f32 to vector<8x128xf32>
    %151 = arith.addf %150, %149 : vector<8x128xf32>
    %152 = arith.divf %150, %151 : vector<8x128xf32>
    %153 = vector.extract_strided_slice %146 {offsets = [0, 128], sizes = [8, 128], strides = [1, 1]} : vector<8x512xf32> to vector<8x128xf32>
    %154 = arith.negf %153 : vector<8x128xf32>
    %155 = math.exp %154 : vector<8x128xf32>
    %cst_42 = arith.constant 1.000000e+00 : f32
    %156 = vector.broadcast %cst_42 : f32 to vector<8x128xf32>
    %157 = arith.addf %156, %155 : vector<8x128xf32>
    %158 = arith.divf %156, %157 : vector<8x128xf32>
    %159 = vector.extract_strided_slice %146 {offsets = [0, 256], sizes = [8, 128], strides = [1, 1]} : vector<8x512xf32> to vector<8x128xf32>
    %160 = math.tanh %159 : vector<8x128xf32>
    %161 = vector.extract_strided_slice %146 {offsets = [0, 384], sizes = [8, 128], strides = [1, 1]} : vector<8x512xf32> to vector<8x128xf32>
    %162 = arith.negf %161 : vector<8x128xf32>
    %163 = math.exp %162 : vector<8x128xf32>
    %cst_43 = arith.constant 1.000000e+00 : f32
    %164 = vector.broadcast %cst_43 : f32 to vector<8x128xf32>
    %165 = arith.addf %164, %163 : vector<8x128xf32>
    %166 = arith.divf %164, %165 : vector<8x128xf32>
    %167 = arith.mulf %158, %135 : vector<8x128xf32>
    %168 = arith.mulf %152, %160 : vector<8x128xf32>
    %169 = arith.addf %167, %168 : vector<8x128xf32>
    %170 = math.tanh %169 : vector<8x128xf32>
    %171 = arith.mulf %166, %170 : vector<8x128xf32>
    %172 = arith.index_cast %c4_i32 : i32 to index
    %c0_44 = arith.constant 0 : index
    %c0_45 = arith.constant 0 : index
    %173 = vector.load %arg3[%172, %c0_44, %c0_45] : memref<8x8x128xf32, #tpu.memory_space<vmem>>, vector<1x8x128xf32>
    %174 = vector.shape_cast %173 : vector<1x8x128xf32> to vector<8x128xf32>
    %175 = vector.shape_cast %171 : vector<8x128xf32> to vector<1x8x128xf32>
    tpu.vector_store %arg3[%172, %c0_44, %c0_45], %175 {strides = array<i32>} : memref<8x8x128xf32, #tpu.memory_space<vmem>>, vector<1x8x128xf32>,
    %c5_i32 = arith.constant 5 : i32
    %176 = arith.index_cast %c5_i32 : i32 to index
    %c0_46 = arith.constant 0 : index
    %c0_47 = arith.constant 0 : index
    %177 = vector.load %arg1[%176, %c0_46, %c0_47] : memref<8x8x512xf32, #tpu.memory_space<vmem>>, vector<1x8x512xf32>
    %178 = vector.shape_cast %177 : vector<1x8x512xf32> to vector<8x512xf32>
    %cst_48 = arith.constant dense<0.000000e+00> : vector<8x512xf32>
    %179 = tpu.matmul %171, %3, %cst_48 {dimension_numbers = #tpu.dot_dimension_numbers<[1], [0], [0], [1], [0, 0, 1, 1], [], []>} : vector<8x128xf32>, vector<128x512xf32>, vector<8x512xf32> -> vector<8x512xf32>
    %180 = arith.addf %178, %179 : vector<8x512xf32>
    %181 = vector.extract_strided_slice %180 {offsets = [0, 0], sizes = [8, 128], strides = [1, 1]} : vector<8x512xf32> to vector<8x128xf32>
    %182 = arith.negf %181 : vector<8x128xf32>
    %183 = math.exp %182 : vector<8x128xf32>
    %cst_49 = arith.constant 1.000000e+00 : f32
    %184 = vector.broadcast %cst_49 : f32 to vector<8x128xf32>
    %185 = arith.addf %184, %183 : vector<8x128xf32>
    %186 = arith.divf %184, %185 : vector<8x128xf32>
    %187 = vector.extract_strided_slice %180 {offsets = [0, 128], sizes = [8, 128], strides = [1, 1]} : vector<8x512xf32> to vector<8x128xf32>
    %188 = arith.negf %187 : vector<8x128xf32>
    %189 = math.exp %188 : vector<8x128xf32>
    %cst_50 = arith.constant 1.000000e+00 : f32
    %190 = vector.broadcast %cst_50 : f32 to vector<8x128xf32>
    %191 = arith.addf %190, %189 : vector<8x128xf32>
    %192 = arith.divf %190, %191 : vector<8x128xf32>
    %193 = vector.extract_strided_slice %180 {offsets = [0, 256], sizes = [8, 128], strides = [1, 1]} : vector<8x512xf32> to vector<8x128xf32>
    %194 = math.tanh %193 : vector<8x128xf32>
    %195 = vector.extract_strided_slice %180 {offsets = [0, 384], sizes = [8, 128], strides = [1, 1]} : vector<8x512xf32> to vector<8x128xf32>
    %196 = arith.negf %195 : vector<8x128xf32>
    %197 = math.exp %196 : vector<8x128xf32>
    %cst_51 = arith.constant 1.000000e+00 : f32
    %198 = vector.broadcast %cst_51 : f32 to vector<8x128xf32>
    %199 = arith.addf %198, %197 : vector<8x128xf32>
    %200 = arith.divf %198, %199 : vector<8x128xf32>
    %201 = arith.mulf %192, %169 : vector<8x128xf32>
    %202 = arith.mulf %186, %194 : vector<8x128xf32>
    %203 = arith.addf %201, %202 : vector<8x128xf32>
    %204 = math.tanh %203 : vector<8x128xf32>
    %205 = arith.mulf %200, %204 : vector<8x128xf32>
    %206 = arith.index_cast %c5_i32 : i32 to index
    %c0_52 = arith.constant 0 : index
    %c0_53 = arith.constant 0 : index
    %207 = vector.load %arg3[%206, %c0_52, %c0_53] : memref<8x8x128xf32, #tpu.memory_space<vmem>>, vector<1x8x128xf32>
    %208 = vector.shape_cast %207 : vector<1x8x128xf32> to vector<8x128xf32>
    %209 = vector.shape_cast %205 : vector<8x128xf32> to vector<1x8x128xf32>
    tpu.vector_store %arg3[%206, %c0_52, %c0_53], %209 {strides = array<i32>} : memref<8x8x128xf32, #tpu.memory_space<vmem>>, vector<1x8x128xf32>,
    %c6_i32 = arith.constant 6 : i32
    %210 = arith.index_cast %c6_i32 : i32 to index
    %c0_54 = arith.constant 0 : index
    %c0_55 = arith.constant 0 : index
    %211 = vector.load %arg1[%210, %c0_54, %c0_55] : memref<8x8x512xf32, #tpu.memory_space<vmem>>, vector<1x8x512xf32>
    %212 = vector.shape_cast %211 : vector<1x8x512xf32> to vector<8x512xf32>
    %cst_56 = arith.constant dense<0.000000e+00> : vector<8x512xf32>
    %213 = tpu.matmul %205, %3, %cst_56 {dimension_numbers = #tpu.dot_dimension_numbers<[1], [0], [0], [1], [0, 0, 1, 1], [], []>} : vector<8x128xf32>, vector<128x512xf32>, vector<8x512xf32> -> vector<8x512xf32>
    %214 = arith.addf %212, %213 : vector<8x512xf32>
    %215 = vector.extract_strided_slice %214 {offsets = [0, 0], sizes = [8, 128], strides = [1, 1]} : vector<8x512xf32> to vector<8x128xf32>
    %216 = arith.negf %215 : vector<8x128xf32>
    %217 = math.exp %216 : vector<8x128xf32>
    %cst_57 = arith.constant 1.000000e+00 : f32
    %218 = vector.broadcast %cst_57 : f32 to vector<8x128xf32>
    %219 = arith.addf %218, %217 : vector<8x128xf32>
    %220 = arith.divf %218, %219 : vector<8x128xf32>
    %221 = vector.extract_strided_slice %214 {offsets = [0, 128], sizes = [8, 128], strides = [1, 1]} : vector<8x512xf32> to vector<8x128xf32>
    %222 = arith.negf %221 : vector<8x128xf32>
    %223 = math.exp %222 : vector<8x128xf32>
    %cst_58 = arith.constant 1.000000e+00 : f32
    %224 = vector.broadcast %cst_58 : f32 to vector<8x128xf32>
    %225 = arith.addf %224, %223 : vector<8x128xf32>
    %226 = arith.divf %224, %225 : vector<8x128xf32>
    %227 = vector.extract_strided_slice %214 {offsets = [0, 256], sizes = [8, 128], strides = [1, 1]} : vector<8x512xf32> to vector<8x128xf32>
    %228 = math.tanh %227 : vector<8x128xf32>
    %229 = vector.extract_strided_slice %214 {offsets = [0, 384], sizes = [8, 128], strides = [1, 1]} : vector<8x512xf32> to vector<8x128xf32>
    %230 = arith.negf %229 : vector<8x128xf32>
    %231 = math.exp %230 : vector<8x128xf32>
    %cst_59 = arith.constant 1.000000e+00 : f32
    %232 = vector.broadcast %cst_59 : f32 to vector<8x128xf32>
    %233 = arith.addf %232, %231 : vector<8x128xf32>
    %234 = arith.divf %232, %233 : vector<8x128xf32>
    %235 = arith.mulf %226, %203 : vector<8x128xf32>
    %236 = arith.mulf %220, %228 : vector<8x128xf32>
    %237 = arith.addf %235, %236 : vector<8x128xf32>
    %238 = math.tanh %237 : vector<8x128xf32>
    %239 = arith.mulf %234, %238 : vector<8x128xf32>
    %240 = arith.index_cast %c6_i32 : i32 to index
    %c0_60 = arith.constant 0 : index
    %c0_61 = arith.constant 0 : index
    %241 = vector.load %arg3[%240, %c0_60, %c0_61] : memref<8x8x128xf32, #tpu.memory_space<vmem>>, vector<1x8x128xf32>
    %242 = vector.shape_cast %241 : vector<1x8x128xf32> to vector<8x128xf32>
    %243 = vector.shape_cast %239 : vector<8x128xf32> to vector<1x8x128xf32>
    tpu.vector_store %arg3[%240, %c0_60, %c0_61], %243 {strides = array<i32>} : memref<8x8x128xf32, #tpu.memory_space<vmem>>, vector<1x8x128xf32>,
    %c7_i32 = arith.constant 7 : i32
    %244 = arith.index_cast %c7_i32 : i32 to index
    %c0_62 = arith.constant 0 : index
    %c0_63 = arith.constant 0 : index
    %245 = vector.load %arg1[%244, %c0_62, %c0_63] : memref<8x8x512xf32, #tpu.memory_space<vmem>>, vector<1x8x512xf32>
    %246 = vector.shape_cast %245 : vector<1x8x512xf32> to vector<8x512xf32>
    %cst_64 = arith.constant dense<0.000000e+00> : vector<8x512xf32>
    %247 = tpu.matmul %239, %3, %cst_64 {dimension_numbers = #tpu.dot_dimension_numbers<[1], [0], [0], [1], [0, 0, 1, 1], [], []>} : vector<8x128xf32>, vector<128x512xf32>, vector<8x512xf32> -> vector<8x512xf32>
    %248 = arith.addf %246, %247 : vector<8x512xf32>
    %249 = vector.extract_strided_slice %248 {offsets = [0, 0], sizes = [8, 128], strides = [1, 1]} : vector<8x512xf32> to vector<8x128xf32>
    %250 = arith.negf %249 : vector<8x128xf32>
    %251 = math.exp %250 : vector<8x128xf32>
    %cst_65 = arith.constant 1.000000e+00 : f32
    %252 = vector.broadcast %cst_65 : f32 to vector<8x128xf32>
    %253 = arith.addf %252, %251 : vector<8x128xf32>
    %254 = arith.divf %252, %253 : vector<8x128xf32>
    %255 = vector.extract_strided_slice %248 {offsets = [0, 128], sizes = [8, 128], strides = [1, 1]} : vector<8x512xf32> to vector<8x128xf32>
    %256 = arith.negf %255 : vector<8x128xf32>
    %257 = math.exp %256 : vector<8x128xf32>
    %cst_66 = arith.constant 1.000000e+00 : f32
    %258 = vector.broadcast %cst_66 : f32 to vector<8x128xf32>
    %259 = arith.addf %258, %257 : vector<8x128xf32>
    %260 = arith.divf %258, %259 : vector<8x128xf32>
    %261 = vector.extract_strided_slice %248 {offsets = [0, 256], sizes = [8, 128], strides = [1, 1]} : vector<8x512xf32> to vector<8x128xf32>
    %262 = math.tanh %261 : vector<8x128xf32>
    %263 = vector.extract_strided_slice %248 {offsets = [0, 384], sizes = [8, 128], strides = [1, 1]} : vector<8x512xf32> to vector<8x128xf32>
    %264 = arith.negf %263 : vector<8x128xf32>
    %265 = math.exp %264 : vector<8x128xf32>
    %cst_67 = arith.constant 1.000000e+00 : f32
    %266 = vector.broadcast %cst_67 : f32 to vector<8x128xf32>
    %267 = arith.addf %266, %265 : vector<8x128xf32>
    %268 = arith.divf %266, %267 : vector<8x128xf32>
    %269 = arith.mulf %260, %237 : vector<8x128xf32>
    %270 = arith.mulf %254, %262 : vector<8x128xf32>
    %271 = arith.addf %269, %270 : vector<8x128xf32>
    %272 = math.tanh %271 : vector<8x128xf32>
    %273 = arith.mulf %268, %272 : vector<8x128xf32>
    %274 = arith.index_cast %c7_i32 : i32 to index
    %c0_68 = arith.constant 0 : index
    %c0_69 = arith.constant 0 : index
    %275 = vector.load %arg3[%274, %c0_68, %c0_69] : memref<8x8x128xf32, #tpu.memory_space<vmem>>, vector<1x8x128xf32>
    %276 = vector.shape_cast %275 : vector<1x8x128xf32> to vector<8x128xf32>
    %277 = vector.shape_cast %273 : vector<8x128xf32> to vector<1x8x128xf32>
    tpu.vector_store %arg3[%274, %c0_68, %c0_69], %277 {strides = array<i32>} : memref<8x8x128xf32, #tpu.memory_space<vmem>>, vector<1x8x128xf32>,
    %c8_i32 = arith.constant 8 : i32
    %c0_70 = arith.constant 0 : index
    %c0_71 = arith.constant 0 : index
    %278 = vector.load %arg5[%c0_70, %c0_71] : memref<8x128xf32, #tpu.memory_space<vmem>>, vector<8x128xf32>
    tpu.vector_store %arg5[%c0_70, %c0_71], %273 {strides = array<i32>} : memref<8x128xf32, #tpu.memory_space<vmem>>, vector<8x128xf32>,
    %c0_72 = arith.constant 0 : index
    %c0_73 = arith.constant 0 : index
    %279 = vector.load %arg6[%c0_72, %c0_73] : memref<8x128xf32, #tpu.memory_space<vmem>>, vector<8x128xf32>
    tpu.vector_store %arg6[%c0_72, %c0_73], %271 {strides = array<i32>} : memref<8x128xf32, #tpu.memory_space<vmem>>, vector<8x128xf32>,
    %c0_74 = arith.constant 0 : index
    %c0_75 = arith.constant 0 : index
    %c0_76 = arith.constant 0 : index
    %280 = vector.load %arg4[%c0_74, %c0_75, %c0_76] : memref<1x8x128xf32, #tpu.memory_space<vmem>>, vector<1x8x128xf32>
    %281 = vector.shape_cast %280 : vector<1x8x128xf32> to vector<8x128xf32>
    %282 = vector.shape_cast %273 : vector<8x128xf32> to vector<1x8x128xf32>
    tpu.vector_store %arg4[%c0_74, %c0_75, %c0_76], %282 {strides = array<i32>} : memref<1x8x128xf32, #tpu.memory_space<vmem>>, vector<1x8x128xf32>,
    return
  }
  func.func @transform_0(%arg0: i32) -> (i32, i32, i32) {
    %c0_i32 = arith.constant 0 : i32
    %c0_i32_0 = arith.constant 0 : i32
    %c0_i32_1 = arith.constant 0 : i32
    return %arg0, %c0_i32, %c0_i32_0 : i32, i32, i32
  }
  func.func @transform_1(%arg0: i32) -> (i32, i32) {
    %c0_i32 = arith.constant 0 : i32
    %c0_i32_0 = arith.constant 0 : i32
    %c0_i32_1 = arith.constant 0 : i32
    return %c0_i32, %c0_i32_0 : i32, i32
  }
  func.func @transform_2(%arg0: i32) -> (i32, i32, i32) {
    %c0_i32 = arith.constant 0 : i32
    %c0_i32_0 = arith.constant 0 : i32
    %c0_i32_1 = arith.constant 0 : i32
    return %arg0, %c0_i32, %c0_i32_0 : i32, i32, i32
  }
  func.func @transform_3(%arg0: i32) -> (i32, i32, i32) {
    %c0_i32 = arith.constant 0 : i32
    %c0_i32_0 = arith.constant 0 : i32
    %c0_i32_1 = arith.constant 0 : i32
    %c0_i32_2 = arith.constant 0 : i32
    return %c0_i32, %c0_i32_0, %c0_i32_1 : i32, i32, i32
  }
}

</mosaic_0001>

<llo_original>
// kernel: lstm_forward.1
$region0: #{lstm_forward.1}
  #allocation0 [shape = 'u32[]', space=smem, size = 0x4, offset = 0x4, fixed_abs, tag = 'smem constant byte address 0x4 - core index']
  #allocation1 [shape = 'u32[72,128]{1,0:T(1,128)}', space=vmem, size = 0x9000, scoped, tag = 'internal scratch']
  #allocation2 [shape = 'f32[8,128]{1,0:T(8,128)}', space=vmem, size = 0x1000, scoped, tag = 'scratch operand']
  #allocation3 [shape = 'f32[8,128]{1,0:T(8,128)}', space=vmem, size = 0x1000, scoped, tag = 'scratch operand']
  %s0 = inlined_call_operand.vmem [shape: f32[8,8,512], index: 0, kind: input, shape index: {}]
  %s1 = inlined_call_operand.vmem [shape: f32[128,512], index: 1, kind: input, shape index: {}]
  %s2 = inlined_call_operand.vmem [shape: f32[8,8,128], index: 2, kind: output, shape index: {0}]
  %s3 = inlined_call_operand.vmem [shape: f32[1,8,128], index: 3, kind: output, shape index: {1}]
  %4 = xla_tuple %s2, %s3
  %s5 = sld [smem:[#allocation0]]
  $region30: #{lstm_forward.1} parent=0
    _
  %s7 = ssub.s32 1, %s5
  %s8 = scalar_select 0, %s7, %s5
  // Predicated region
  $region2: #{lstm_forward.1} parent=0 // pred_check
    _
  $region3: #{lstm_forward.1} parent=0 // pred_check_branch
    %10 = sbr.rel (0) target = $region5
  $region4: #{lstm_forward.1} parent=0 // pred_region
    _
  $region5: #{lstm_forward.1} parent=0 // pred_fallthru
    _
  // Predicated region
  $region6: #{lstm_forward.1} parent=0 // pred_check
    _
  $region7: #{lstm_forward.1} parent=0 // pred_check_branch
    %12 = sbr.rel (0) target = $region9
  $region8: #{lstm_forward.1} parent=0 // pred_region
    _
  $region9: #{lstm_forward.1} parent=0 // pred_fallthru
    _
  %p13 = scmp.eq.s32.totalorder 0, 0
  // Predicated region
  $region10: #{lstm_forward.1} parent=0 // pred_check
    %p14 = pneg %p13
  $region11: #{lstm_forward.1} parent=0 // pred_check_branch
    %16 = sbr.rel (%p14) target = $region13
  $region12: #{lstm_forward.1} parent=0 // pred_region
    %17 = vst [vmem:[#allocation2] sm:$0xff] 0.0
    %18 = vst [vmem:[#allocation3] sm:$0xff] 0.0
  $region13: #{lstm_forward.1} parent=0 // pred_fallthru
    _
  %v19 = vld [vmem:[%s1] sm:$0xff]
  %v20 = vld [vmem:[%s1 + $0x8] sm:$0xff]
  %v21 = vld [vmem:[%s1 + $0x10] sm:$0xff]
  %v22 = vld [vmem:[%s1 + $0x18] sm:$0xff]
  %v23 = vld [vmem:[%s1 + $0x20] sm:$0xff]
  %v24 = vld [vmem:[%s1 + $0x28] sm:$0xff]
  %v25 = vld [vmem:[%s1 + $0x30] sm:$0xff]
  %v26 = vld [vmem:[%s1 + $0x38] sm:$0xff]
  %v27 = vld [vmem:[%s1 + $0x40] sm:$0xff]
  %v28 = vld [vmem:[%s1 + $0x48] sm:$0xff]
  %v29 = vld [vmem:[%s1 + $0x50] sm:$0xff]
  %v30 = vld [vmem:[%s1 + $0x58] sm:$0xff]
  %v31 = vld [vmem:[%s1 + $0x60] sm:$0xff]
  %v32 = vld [vmem:[%s1 + $0x68] sm:$0xff]
  %v33 = vld [vmem:[%s1 + $0x70] sm:$0xff]
  %v34 = vld [vmem:[%s1 + $0x78] sm:$0xff]
  %v35 = vld [vmem:[%s1 + $0x80] sm:$0xff]
  %v36 = vld [vmem:[%s1 + $0x88] sm:$0xff]
  %v37 = vld [vmem:[%s1 + $0x90] sm:$0xff]
  %v38 = vld [vmem:[%s1 + $0x98] sm:$0xff]
  %v39 = vld [vmem:[%s1 + $0xa0] sm:$0xff]
  %v40 = vld [vmem:[%s1 + $0xa8] sm:$0xff]
  %v41 = vld [vmem:[%s1 + $0xb0] sm:$0xff]
  %v42 = vld [vmem:[%s1 + $0xb8] sm:$0xff]
  %v43 = vld [vmem:[%s1 + $0xc0] sm:$0xff]
  %v44 = vld [vmem:[%s1 + $0xc8] sm:$0xff]
  %v45 = vld [vmem:[%s1 + $0xd0] sm:$0xff]
  %v46 = vld [vmem:[%s1 + $0xd8] sm:$0xff]
  %v47 = vld [vmem:[%s1 + $0xe0] sm:$0xff]
  %v48 = vld [vmem:[%s1 + $0xe8] sm:$0xff]
  %v49 = vld [vmem:[%s1 + $0xf0] sm:$0xff]
  %v50 = vld [vmem:[%s1 + $0xf8] sm:$0xff]
  %v51 = vld [vmem:[%s1 + $0x100] sm:$0xff]
  %v52 = vld [vmem:[%s1 + $0x108] sm:$0xff]
  %v53 = vld [vmem:[%s1 + $0x110] sm:$0xff]
  %v54 = vld [vmem:[%s1 + $0x118] sm:$0xff]
  %v55 = vld [vmem:[%s1 + $0x120] sm:$0xff]
  %v56 = vld [vmem:[%s1 + $0x128] sm:$0xff]
  %v57 = vld [vmem:[%s1 + $0x130] sm:$0xff]
  %v58 = vld [vmem:[%s1 + $0x138] sm:$0xff]
  %v59 = vld [vmem:[%s1 + $0x140] sm:$0xff]
  %v60 = vld [vmem:[%s1 + $0x148] sm:$0xff]
  %v61 = vld [vmem:[%s1 + $0x150] sm:$0xff]
  %v62 = vld [vmem:[%s1 + $0x158] sm:$0xff]
  %v63 = vld [vmem:[%s1 + $0x160] sm:$0xff]
  %v64 = vld [vmem:[%s1 + $0x168] sm:$0xff]
  %v65 = vld [vmem:[%s1 + $0x170] sm:$0xff]
  %v66 = vld [vmem:[%s1 + $0x178] sm:$0xff]
  %v67 = vld [vmem:[%s1 + $0x180] sm:$0xff]
  %v68 = vld [vmem:[%s1 + $0x188] sm:$0xff]
  %v69 = vld [vmem:[%s1 + $0x190] sm:$0xff]
  %v70 = vld [vmem:[%s1 + $0x198] sm:$0xff]
  %v71 = vld [vmem:[%s1 + $0x1a0] sm:$0xff]
  %v72 = vld [vmem:[%s1 + $0x1a8] sm:$0xff]
  %v73 = vld [vmem:[%s1 + $0x1b0] sm:$0xff]
  %v74 = vld [vmem:[%s1 + $0x1b8] sm:$0xff]
  %v75 = vld [vmem:[%s1 + $0x1c0] sm:$0xff]
  %v76 = vld [vmem:[%s1 + $0x1c8] sm:$0xff]
  %v77 = vld [vmem:[%s1 + $0x1d0] sm:$0xff]
  %v78 = vld [vmem:[%s1 + $0x1d8] sm:$0xff]
  %v79 = vld [vmem:[%s1 + $0x1e0] sm:$0xff]
  %v80 = vld [vmem:[%s1 + $0x1e8] sm:$0xff]
  %v81 = vld [vmem:[%s1 + $0x1f0] sm:$0xff]
  %v82 = vld [vmem:[%s1 + $0x1f8] sm:$0xff]
  %v83 = vld [vmem:[#allocation2] sm:$0xff]
  %v84 = vld [vmem:[#allocation3] sm:$0xff]
  %v85 = vld [vmem:[%s0] sm:$0xff]
  %v86 = vld [vmem:[%s0 + $0x8] sm:$0xff]
  %v87 = vld [vmem:[%s0 + $0x10] sm:$0xff]
  %v88 = vld [vmem:[%s0 + $0x18] sm:$0xff]
  %89 = vmatpush.msra.mxu0 %v79
  %90 = vmatpush.msra.mxu0 %v75
  %91 = vmatpush.msra.mxu0 %v71
  %92 = vmatpush.msra.mxu0 %v67
  %93 = vmatpush.msra.mxu0 %v63
  %94 = vmatpush.msra.mxu0 %v59
  %95 = vmatpush.msra.mxu0 %v55
  %96 = vmatpush.msra.mxu0 %v51
  %97 = vmatpush.msra.mxu0 %v47
  %98 = vmatpush.msra.mxu0 %v43
  %99 = vmatpush.msra.mxu0 %v39
  %100 = vmatpush.msra.mxu0 %v35
  %101 = vmatpush.msra.mxu0 %v31
  %102 = vmatpush.msra.mxu0 %v27
  %103 = vmatpush.msra.mxu0 %v23
  %104 = vmatpush.msra.mxu0 %v19
  %105 = vmatmul.f32.gmra.mxu0 %v83
  %v106 = vpop.f32.mrf.mxu0
  %v107 = vadd.f32 0.0, %v106
  %108 = vdwg.mxu0
  %109 = vmatpush.msra.mxu0 %v80
  %110 = vmatpush.msra.mxu0 %v76
  %111 = vmatpush.msra.mxu0 %v72
  %112 = vmatpush.msra.mxu0 %v68
  %113 = vmatpush.msra.mxu0 %v64
  %114 = vmatpush.msra.mxu0 %v60
  %115 = vmatpush.msra.mxu0 %v56
  %116 = vmatpush.msra.mxu0 %v52
  %117 = vmatpush.msra.mxu0 %v48
  %118 = vmatpush.msra.mxu0 %v44
  %119 = vmatpush.msra.mxu0 %v40
  %120 = vmatpush.msra.mxu0 %v36
  %121 = vmatpush.msra.mxu0 %v32
  %122 = vmatpush.msra.mxu0 %v28
  %123 = vmatpush.msra.mxu0 %v24
  %124 = vmatpush.msra.mxu0 %v20
  %125 = vmatmul.f32.gmra.mxu0 %v83
  %v126 = vpop.f32.mrf.mxu0
  %v127 = vadd.f32 0.0, %v126
  %128 = vdwg.mxu0
  %129 = vmatpush.msra.mxu0 %v81
  %130 = vmatpush.msra.mxu0 %v77
  %131 = vmatpush.msra.mxu0 %v73
  %132 = vmatpush.msra.mxu0 %v69
  %133 = vmatpush.msra.mxu0 %v65
  %134 = vmatpush.msra.mxu0 %v61
  %135 = vmatpush.msra.mxu0 %v57
  %136 = vmatpush.msra.mxu0 %v53
  %137 = vmatpush.msra.mxu0 %v49
  %138 = vmatpush.msra.mxu0 %v45
  %139 = vmatpush.msra.mxu0 %v41
  %140 = vmatpush.msra.mxu0 %v37
  %141 = vmatpush.msra.mxu0 %v33
  %142 = vmatpush.msra.mxu0 %v29
  %143 = vmatpush.msra.mxu0 %v25
  %144 = vmatpush.msra.mxu0 %v21
  %145 = vmatmul.f32.gmra.mxu0 %v83
  %v146 = vpop.f32.mrf.mxu0
  %v147 = vadd.f32 0.0, %v146
  %148 = vdwg.mxu0
  %149 = vmatpush.msra.mxu0 %v82
  %150 = vmatpush.msra.mxu0 %v78
  %151 = vmatpush.msra.mxu0 %v74
  %152 = vmatpush.msra.mxu0 %v70
  %153 = vmatpush.msra.mxu0 %v66
  %154 = vmatpush.msra.mxu0 %v62
  %155 = vmatpush.msra.mxu0 %v58
  %156 = vmatpush.msra.mxu0 %v54
  %157 = vmatpush.msra.mxu0 %v50
  %158 = vmatpush.msra.mxu0 %v46
  %159 = vmatpush.msra.mxu0 %v42
  %160 = vmatpush.msra.mxu0 %v38
  %161 = vmatpush.msra.mxu0 %v34
  %162 = vmatpush.msra.mxu0 %v30
  %163 = vmatpush.msra.mxu0 %v26
  %164 = vmatpush.msra.mxu0 %v22
  %165 = vmatmul.f32.gmra.mxu0 %v83
  %v166 = vpop.f32.mrf.mxu0
  %v167 = vadd.f32 0.0, %v166
  %168 = vdwg.mxu0
  %v169 = vadd.f32 %v85, %v107
  %v170 = vadd.f32 %v86, %v127
  %v171 = vadd.f32 %v87, %v147
  %v172 = vadd.f32 %v88, %v167
  %v173 = vxor.u32 %v169, 2147483648
  %v174 = vmul.f32 %v173, 1.442695
  %v175 = vpow.pop %v174
  %v176 = vadd.f32 %v175, 1.0
  %v177 = vrcp.pop %v176
  %v178 = vmul.f32 %v176, %v177
  %v179 = vsub.f32 1.0, %v178
  %v180 = vmul.f32 %v177, %v179
  %v181 = vadd.f32 %v177, %v180
  %vm182 = vweird.f32 %v176
  %vm183 = vweird.f32 %v177
  %vm184 = vmor %vm182, %vm183
  %v185 = vsel %vm184, %v177, %v181
  %v186 = vand.u32 2147483647, %v176
  %vm187 = vcmp.eq.f32.partialorder %v186, 8.507059e+37
  %v188 = vand.u32 %v176, 2147483648
  %v189 = vor.u32 1.1754944e-38, %v188
  %v190 = vsel %vm187, %v189, %v185
  %v191 = vmul.f32 1.0, %v190
  %v192 = vxor.u32 %v170, 2147483648
  %v193 = vmul.f32 %v192, 1.442695
  %v194 = vpow.pop %v193
  %v195 = vadd.f32 %v194, 1.0
  %v196 = vrcp.pop %v195
  %v197 = vmul.f32 %v195, %v196
  %v198 = vsub.f32 1.0, %v197
  %v199 = vmul.f32 %v196, %v198
  %v200 = vadd.f32 %v196, %v199
  %vm201 = vweird.f32 %v195
  %vm202 = vweird.f32 %v196
  %vm203 = vmor %vm201, %vm202
  %v204 = vsel %vm203, %v196, %v200
  %v205 = vand.u32 2147483647, %v195
  %vm206 = vcmp.eq.f32.partialorder %v205, 8.507059e+37
  %v207 = vand.u32 %v195, 2147483648
  %v208 = vor.u32 1.1754944e-38, %v207
  %v209 = vsel %vm206, %v208, %v204
  %v210 = vmul.f32 1.0, %v209
  %v211 = vtanh.pop %v171
  %v212 = vxor.u32 %v172, 2147483648
  %v213 = vmul.f32 %v212, 1.442695
  %v214 = vpow.pop %v213
  %v215 = vadd.f32 %v214, 1.0
  %v216 = vrcp.pop %v215
  %v217 = vmul.f32 %v215, %v216
  %v218 = vsub.f32 1.0, %v217
  %v219 = vmul.f32 %v216, %v218
  %v220 = vadd.f32 %v216, %v219
  %vm221 = vweird.f32 %v215
  %vm222 = vweird.f32 %v216
  %vm223 = vmor %vm221, %vm222
  %v224 = vsel %vm223, %v216, %v220
  %v225 = vand.u32 2147483647, %v215
  %vm226 = vcmp.eq.f32.partialorder %v225, 8.507059e+37
  %v227 = vand.u32 %v215, 2147483648
  %v228 = vor.u32 1.1754944e-38, %v227
  %v229 = vsel %vm226, %v228, %v224
  %v230 = vmul.f32 1.0, %v229
  %v231 = vmul.f32 %v210, %v84
  %v232 = vmul.f32 %v191, %v211
  %v233 = vadd.f32 %v231, %v232
  %v234 = vtanh.pop %v233
  %v235 = vmul.f32 %v230, %v234
  %236 = vst [vmem:[%s2] sm:$0xff] %v235
  %s237 = scalar_lea.vmem %s0, 32
  %v238 = vld [vmem:[%s237] sm:$0xff]
  %v239 = vld [vmem:[%s237 + $0x8] sm:$0xff]
  %v240 = vld [vmem:[%s237 + $0x10] sm:$0xff]
  %v241 = vld [vmem:[%s237 + $0x18] sm:$0xff]
  %242 = vmatpush.msra.mxu0 %v79
  %243 = vmatpush.msra.mxu0 %v75
  %244 = vmatpush.msra.mxu0 %v71
  %245 = vmatpush.msra.mxu0 %v67
  %246 = vmatpush.msra.mxu0 %v63
  %247 = vmatpush.msra.mxu0 %v59
  %248 = vmatpush.msra.mxu0 %v55
  %249 = vmatpush.msra.mxu0 %v51
  %250 = vmatpush.msra.mxu0 %v47
  %251 = vmatpush.msra.mxu0 %v43
  %252 = vmatpush.msra.mxu0 %v39
  %253 = vmatpush.msra.mxu0 %v35
  %254 = vmatpush.msra.mxu0 %v31
  %255 = vmatpush.msra.mxu0 %v27
  %256 = vmatpush.msra.mxu0 %v23
  %257 = vmatpush.msra.mxu0 %v19
  %258 = vmatmul.f32.gmra.mxu0 %v235
  %v259 = vpop.f32.mrf.mxu0
  %v260 = vadd.f32 0.0, %v259
  %261 = vdwg.mxu0
  %262 = vmatpush.msra.mxu0 %v80
  %263 = vmatpush.msra.mxu0 %v76
  %264 = vmatpush.msra.mxu0 %v72
  %265 = vmatpush.msra.mxu0 %v68
  %266 = vmatpush.msra.mxu0 %v64
  %267 = vmatpush.msra.mxu0 %v60
  %268 = vmatpush.msra.mxu0 %v56
  %269 = vmatpush.msra.mxu0 %v52
  %270 = vmatpush.msra.mxu0 %v48
  %271 = vmatpush.msra.mxu0 %v44
  %272 = vmatpush.msra.mxu0 %v40
  %273 = vmatpush.msra.mxu0 %v36
  %274 = vmatpush.msra.mxu0 %v32
  %275 = vmatpush.msra.mxu0 %v28
  %276 = vmatpush.msra.mxu0 %v24
  %277 = vmatpush.msra.mxu0 %v20
  %278 = vmatmul.f32.gmra.mxu0 %v235
  %v279 = vpop.f32.mrf.mxu0
  %v280 = vadd.f32 0.0, %v279
  %281 = vdwg.mxu0
  %282 = vmatpush.msra.mxu0 %v81
  %283 = vmatpush.msra.mxu0 %v77
  %284 = vmatpush.msra.mxu0 %v73
  %285 = vmatpush.msra.mxu0 %v69
  %286 = vmatpush.msra.mxu0 %v65
  %287 = vmatpush.msra.mxu0 %v61
  %288 = vmatpush.msra.mxu0 %v57
  %289 = vmatpush.msra.mxu0 %v53
  %290 = vmatpush.msra.mxu0 %v49
  %291 = vmatpush.msra.mxu0 %v45
  %292 = vmatpush.msra.mxu0 %v41
  %293 = vmatpush.msra.mxu0 %v37
  %294 = vmatpush.msra.mxu0 %v33
  %295 = vmatpush.msra.mxu0 %v29
  %296 = vmatpush.msra.mxu0 %v25
  %297 = vmatpush.msra.mxu0 %v21
  %298 = vmatmul.f32.gmra.mxu0 %v235
  %v299 = vpop.f32.mrf.mxu0
  %v300 = vadd.f32 0.0, %v299
  %301 = vdwg.mxu0
  %302 = vmatpush.msra.mxu0 %v82
  %303 = vmatpush.msra.mxu0 %v78
  %304 = vmatpush.msra.mxu0 %v74
  %305 = vmatpush.msra.mxu0 %v70
  %306 = vmatpush.msra.mxu0 %v66
  %307 = vmatpush.msra.mxu0 %v62
  %308 = vmatpush.msra.mxu0 %v58
  %309 = vmatpush.msra.mxu0 %v54
  %310 = vmatpush.msra.mxu0 %v50
  %311 = vmatpush.msra.mxu0 %v46
  %312 = vmatpush.msra.mxu0 %v42
  %313 = vmatpush.msra.mxu0 %v38
  %314 = vmatpush.msra.mxu0 %v34
  %315 = vmatpush.msra.mxu0 %v30
  %316 = vmatpush.msra.mxu0 %v26
  %317 = vmatpush.msra.mxu0 %v22
  %318 = vmatmul.f32.gmra.mxu0 %v235
  %v319 = vpop.f32.mrf.mxu0
  %v320 = vadd.f32 0.0, %v319
  %321 = vdwg.mxu0
  %v322 = vadd.f32 %v238, %v260
  %v323 = vadd.f32 %v239, %v280
  %v324 = vadd.f32 %v240, %v300
  %v325 = vadd.f32 %v241, %v320
  %v326 = vxor.u32 %v322, 2147483648
  %v327 = vmul.f32 %v326, 1.442695
  %v328 = vpow.pop %v327
  %v329 = vadd.f32 %v328, 1.0
  %v330 = vrcp.pop %v329
  %v331 = vmul.f32 %v329, %v330
  %v332 = vsub.f32 1.0, %v331
  %v333 = vmul.f32 %v330, %v332
  %v334 = vadd.f32 %v330, %v333
  %vm335 = vweird.f32 %v329
  %vm336 = vweird.f32 %v330
  %vm337 = vmor %vm335, %vm336
  %v338 = vsel %vm337, %v330, %v334
  %v339 = vand.u32 2147483647, %v329
  %vm340 = vcmp.eq.f32.partialorder %v339, 8.507059e+37
  %v341 = vand.u32 %v329, 2147483648
  %v342 = vor.u32 1.1754944e-38, %v341
  %v343 = vsel %vm340, %v342, %v338
  %v344 = vmul.f32 1.0, %v343
  %v345 = vxor.u32 %v323, 2147483648
  %v346 = vmul.f32 %v345, 1.442695
  %v347 = vpow.pop %v346
  %v348 = vadd.f32 %v347, 1.0
  %v349 = vrcp.pop %v348
  %v350 = vmul.f32 %v348, %v349
  %v351 = vsub.f32 1.0, %v350
  %v352 = vmul.f32 %v349, %v351
  %v353 = vadd.f32 %v349, %v352
  %vm354 = vweird.f32 %v348
  %vm355 = vweird.f32 %v349
  %vm356 = vmor %vm354, %vm355
  %v357 = vsel %vm356, %v349, %v353
  %v358 = vand.u32 2147483647, %v348
  %vm359 = vcmp.eq.f32.partialorder %v358, 8.507059e+37
  %v360 = vand.u32 %v348, 2147483648
  %v361 = vor.u32 1.1754944e-38, %v360
  %v362 = vsel %vm359, %v361, %v357
  %v363 = vmul.f32 1.0, %v362
  %v364 = vtanh.pop %v324
  %v365 = vxor.u32 %v325, 2147483648
  %v366 = vmul.f32 %v365, 1.442695
  %v367 = vpow.pop %v366
  %v368 = vadd.f32 %v367, 1.0
  %v369 = vrcp.pop %v368
  %v370 = vmul.f32 %v368, %v369
  %v371 = vsub.f32 1.0, %v370
  %v372 = vmul.f32 %v369, %v371
  %v373 = vadd.f32 %v369, %v372
  %vm374 = vweird.f32 %v368
  %vm375 = vweird.f32 %v369
  %vm376 = vmor %vm374, %vm375
  %v377 = vsel %vm376, %v369, %v373
  %v378 = vand.u32 2147483647, %v368
  %vm379 = vcmp.eq.f32.partialorder %v378, 8.507059e+37
  %v380 = vand.u32 %v368, 2147483648
  %v381 = vor.u32 1.1754944e-38, %v380
  %v382 = vsel %vm379, %v381, %v377
  %v383 = vmul.f32 1.0, %v382
  %v384 = vmul.f32 %v363, %v233
  %v385 = vmul.f32 %v344, %v364
  %v386 = vadd.f32 %v384, %v385
  %v387 = vtanh.pop %v386
  %v388 = vmul.f32 %v383, %v387
  %s389 = scalar_lea.vmem %s2, 8
  %390 = vst [vmem:[%s389] sm:$0xff] %v388
  %s391 = scalar_lea.vmem %s0, 64
  %v392 = vld [vmem:[%s391] sm:$0xff]
  %v393 = vld [vmem:[%s391 + $0x8] sm:$0xff]
  %v394 = vld [vmem:[%s391 + $0x10] sm:$0xff]
  %v395 = vld [vmem:[%s391 + $0x18] sm:$0xff]
  %396 = vmatpush.msra.mxu0 %v79
  %397 = vmatpush.msra.mxu0 %v75
  %398 = vmatpush.msra.mxu0 %v71
  %399 = vmatpush.msra.mxu0 %v67
  %400 = vmatpush.msra.mxu0 %v63
  %401 = vmatpush.msra.mxu0 %v59
  %402 = vmatpush.msra.mxu0 %v55
  %403 = vmatpush.msra.mxu0 %v51
  %404 = vmatpush.msra.mxu0 %v47
  %405 = vmatpush.msra.mxu0 %v43
  %406 = vmatpush.msra.mxu0 %v39
  %407 = vmatpush.msra.mxu0 %v35
  %408 = vmatpush.msra.mxu0 %v31
  %409 = vmatpush.msra.mxu0 %v27
  %410 = vmatpush.msra.mxu0 %v23
  %411 = vmatpush.msra.mxu0 %v19
  %412 = vmatmul.f32.gmra.mxu0 %v388
  %v413 = vpop.f32.mrf.mxu0
  %v414 = vadd.f32 0.0, %v413
  %415 = vdwg.mxu0
  %416 = vmatpush.msra.mxu0 %v80
  %417 = vmatpush.msra.mxu0 %v76
  %418 = vmatpush.msra.mxu0 %v72
  %419 = vmatpush.msra.mxu0 %v68
  %420 = vmatpush.msra.mxu0 %v64
  %421 = vmatpush.msra.mxu0 %v60
  %422 = vmatpush.msra.mxu0 %v56
  %423 = vmatpush.msra.mxu0 %v52
  %424 = vmatpush.msra.mxu0 %v48
  %425 = vmatpush.msra.mxu0 %v44
  %426 = vmatpush.msra.mxu0 %v40
  %427 = vmatpush.msra.mxu0 %v36
  %428 = vmatpush.msra.mxu0 %v32
  %429 = vmatpush.msra.mxu0 %v28
  %430 = vmatpush.msra.mxu0 %v24
  %431 = vmatpush.msra.mxu0 %v20
  %432 = vmatmul.f32.gmra.mxu0 %v388
  %v433 = vpop.f32.mrf.mxu0
  %v434 = vadd.f32 0.0, %v433
  %435 = vdwg.mxu0
  %436 = vmatpush.msra.mxu0 %v81
  %437 = vmatpush.msra.mxu0 %v77
  %438 = vmatpush.msra.mxu0 %v73
  %439 = vmatpush.msra.mxu0 %v69
  %440 = vmatpush.msra.mxu0 %v65
  %441 = vmatpush.msra.mxu0 %v61
  %442 = vmatpush.msra.mxu0 %v57
  %443 = vmatpush.msra.mxu0 %v53
  %444 = vmatpush.msra.mxu0 %v49
  %445 = vmatpush.msra.mxu0 %v45
  %446 = vmatpush.msra.mxu0 %v41
  %447 = vmatpush.msra.mxu0 %v37
  %448 = vmatpush.msra.mxu0 %v33
  %449 = vmatpush.msra.mxu0 %v29
  %450 = vmatpush.msra.mxu0 %v25
  %451 = vmatpush.msra.mxu0 %v21
  %452 = vmatmul.f32.gmra.mxu0 %v388
  %v453 = vpop.f32.mrf.mxu0
  %v454 = vadd.f32 0.0, %v453
  %455 = vdwg.mxu0
  %456 = vmatpush.msra.mxu0 %v82
  %457 = vmatpush.msra.mxu0 %v78
  %458 = vmatpush.msra.mxu0 %v74
  %459 = vmatpush.msra.mxu0 %v70
  %460 = vmatpush.msra.mxu0 %v66
  %461 = vmatpush.msra.mxu0 %v62
  %462 = vmatpush.msra.mxu0 %v58
  %463 = vmatpush.msra.mxu0 %v54
  %464 = vmatpush.msra.mxu0 %v50
  %465 = vmatpush.msra.mxu0 %v46
  %466 = vmatpush.msra.mxu0 %v42
  %467 = vmatpush.msra.mxu0 %v38
  %468 = vmatpush.msra.mxu0 %v34
  %469 = vmatpush.msra.mxu0 %v30
  %470 = vmatpush.msra.mxu0 %v26
  %471 = vmatpush.msra.mxu0 %v22
  %472 = vmatmul.f32.gmra.mxu0 %v388
  %v473 = vpop.f32.mrf.mxu0
  %v474 = vadd.f32 0.0, %v473
  %475 = vdwg.mxu0
  %v476 = vadd.f32 %v392, %v414
  %v477 = vadd.f32 %v393, %v434
  %v478 = vadd.f32 %v394, %v454
  %v479 = vadd.f32 %v395, %v474
  %v480 = vxor.u32 %v476, 2147483648
  %v481 = vmul.f32 %v480, 1.442695
  %v482 = vpow.pop %v481
  %v483 = vadd.f32 %v482, 1.0
  %v484 = vrcp.pop %v483
  %v485 = vmul.f32 %v483, %v484
  %v486 = vsub.f32 1.0, %v485
  %v487 = vmul.f32 %v484, %v486
  %v488 = vadd.f32 %v484, %v487
  %vm489 = vweird.f32 %v483
  %vm490 = vweird.f32 %v484
  %vm491 = vmor %vm489, %vm490
  %v492 = vsel %vm491, %v484, %v488
  %v493 = vand.u32 2147483647, %v483
  %vm494 = vcmp.eq.f32.partialorder %v493, 8.507059e+37
  %v495 = vand.u32 %v483, 2147483648
  %v496 = vor.u32 1.1754944e-38, %v495
  %v497 = vsel %vm494, %v496, %v492
  %v498 = vmul.f32 1.0, %v497
  %v499 = vxor.u32 %v477, 2147483648
  %v500 = vmul.f32 %v499, 1.442695
  %v501 = vpow.pop %v500
  %v502 = vadd.f32 %v501, 1.0
  %v503 = vrcp.pop %v502
  %v504 = vmul.f32 %v502, %v503
  %v505 = vsub.f32 1.0, %v504
  %v506 = vmul.f32 %v503, %v505
  %v507 = vadd.f32 %v503, %v506
  %vm508 = vweird.f32 %v502
  %vm509 = vweird.f32 %v503
  %vm510 = vmor %vm508, %vm509
  %v511 = vsel %vm510, %v503, %v507
  %v512 = vand.u32 2147483647, %v502
  %vm513 = vcmp.eq.f32.partialorder %v512, 8.507059e+37
  %v514 = vand.u32 %v502, 2147483648
  %v515 = vor.u32 1.1754944e-38, %v514
  %v516 = vsel %vm513, %v515, %v511
  %v517 = vmul.f32 1.0, %v516
  %v518 = vtanh.pop %v478
  %v519 = vxor.u32 %v479, 2147483648
  %v520 = vmul.f32 %v519, 1.442695
  %v521 = vpow.pop %v520
  %v522 = vadd.f32 %v521, 1.0
  %v523 = vrcp.pop %v522
  %v524 = vmul.f32 %v522, %v523
  %v525 = vsub.f32 1.0, %v524
  %v526 = vmul.f32 %v523, %v525
  %v527 = vadd.f32 %v523, %v526
  %vm528 = vweird.f32 %v522
  %vm529 = vweird.f32 %v523
  %vm530 = vmor %vm528, %vm529
  %v531 = vsel %vm530, %v523, %v527
  %v532 = vand.u32 2147483647, %v522
  %vm533 = vcmp.eq.f32.partialorder %v532, 8.507059e+37
  %v534 = vand.u32 %v522, 2147483648
  %v535 = vor.u32 1.1754944e-38, %v534
  %v536 = vsel %vm533, %v535, %v531
  %v537 = vmul.f32 1.0, %v536
  %v538 = vmul.f32 %v517, %v386
  %v539 = vmul.f32 %v498, %v518
  %v540 = vadd.f32 %v538, %v539
  %v541 = vtanh.pop %v540
  %v542 = vmul.f32 %v537, %v541
  %s543 = scalar_lea.vmem %s2, 16
  %544 = vst [vmem:[%s543] sm:$0xff] %v542
  %s545 = scalar_lea.vmem %s0, 96
  %v546 = vld [vmem:[%s545] sm:$0xff]
  %v547 = vld [vmem:[%s545 + $0x8] sm:$0xff]
  %v548 = vld [vmem:[%s545 + $0x10] sm:$0xff]
  %v549 = vld [vmem:[%s545 + $0x18] sm:$0xff]
  %550 = vmatpush.msra.mxu0 %v79
  %551 = vmatpush.msra.mxu0 %v75
  %552 = vmatpush.msra.mxu0 %v71
  %553 = vmatpush.msra.mxu0 %v67
  %554 = vmatpush.msra.mxu0 %v63
  %555 = vmatpush.msra.mxu0 %v59
  %556 = vmatpush.msra.mxu0 %v55
  %557 = vmatpush.msra.mxu0 %v51
  %558 = vmatpush.msra.mxu0 %v47
  %559 = vmatpush.msra.mxu0 %v43
  %560 = vmatpush.msra.mxu0 %v39
  %561 = vmatpush.msra.mxu0 %v35
  %562 = vmatpush.msra.mxu0 %v31
  %563 = vmatpush.msra.mxu0 %v27
  %564 = vmatpush.msra.mxu0 %v23
  %565 = vmatpush.msra.mxu0 %v19
  %566 = vmatmul.f32.gmra.mxu0 %v542
  %v567 = vpop.f32.mrf.mxu0
  %v568 = vadd.f32 0.0, %v567
  %569 = vdwg.mxu0
  %570 = vmatpush.msra.mxu0 %v80
  %571 = vmatpush.msra.mxu0 %v76
  %572 = vmatpush.msra.mxu0 %v72
  %573 = vmatpush.msra.mxu0 %v68
  %574 = vmatpush.msra.mxu0 %v64
  %575 = vmatpush.msra.mxu0 %v60
  %576 = vmatpush.msra.mxu0 %v56
  %577 = vmatpush.msra.mxu0 %v52
  %578 = vmatpush.msra.mxu0 %v48
  %579 = vmatpush.msra.mxu0 %v44
  %580 = vmatpush.msra.mxu0 %v40
  %581 = vmatpush.msra.mxu0 %v36
  %582 = vmatpush.msra.mxu0 %v32
  %583 = vmatpush.msra.mxu0 %v28
  %584 = vmatpush.msra.mxu0 %v24
  %585 = vmatpush.msra.mxu0 %v20
  %586 = vmatmul.f32.gmra.mxu0 %v542
  %v587 = vpop.f32.mrf.mxu0
  %v588 = vadd.f32 0.0, %v587
  %589 = vdwg.mxu0
  %590 = vmatpush.msra.mxu0 %v81
  %591 = vmatpush.msra.mxu0 %v77
  %592 = vmatpush.msra.mxu0 %v73
  %593 = vmatpush.msra.mxu0 %v69
  %594 = vmatpush.msra.mxu0 %v65
  %595 = vmatpush.msra.mxu0 %v61
  %596 = vmatpush.msra.mxu0 %v57
  %597 = vmatpush.msra.mxu0 %v53
  %598 = vmatpush.msra.mxu0 %v49
  %599 = vmatpush.msra.mxu0 %v45
  %600 = vmatpush.msra.mxu0 %v41
  %601 = vmatpush.msra.mxu0 %v37
  %602 = vmatpush.msra.mxu0 %v33
  %603 = vmatpush.msra.mxu0 %v29
  %604 = vmatpush.msra.mxu0 %v25
  %605 = vmatpush.msra.mxu0 %v21
  %606 = vmatmul.f32.gmra.mxu0 %v542
  %v607 = vpop.f32.mrf.mxu0
  %v608 = vadd.f32 0.0, %v607
  %609 = vdwg.mxu0
  %610 = vmatpush.msra.mxu0 %v82
  %611 = vmatpush.msra.mxu0 %v78
  %612 = vmatpush.msra.mxu0 %v74
  %613 = vmatpush.msra.mxu0 %v70
  %614 = vmatpush.msra.mxu0 %v66
  %615 = vmatpush.msra.mxu0 %v62
  %616 = vmatpush.msra.mxu0 %v58
  %617 = vmatpush.msra.mxu0 %v54
  %618 = vmatpush.msra.mxu0 %v50
  %619 = vmatpush.msra.mxu0 %v46
  %620 = vmatpush.msra.mxu0 %v42
  %621 = vmatpush.msra.mxu0 %v38
  %622 = vmatpush.msra.mxu0 %v34
  %623 = vmatpush.msra.mxu0 %v30
  %624 = vmatpush.msra.mxu0 %v26
  %625 = vmatpush.msra.mxu0 %v22
  %626 = vmatmul.f32.gmra.mxu0 %v542
  %v627 = vpop.f32.mrf.mxu0
  %v628 = vadd.f32 0.0, %v627
  %629 = vdwg.mxu0
  %v630 = vadd.f32 %v546, %v568
  %v631 = vadd.f32 %v547, %v588
  %v632 = vadd.f32 %v548, %v608
  %v633 = vadd.f32 %v549, %v628
  %v634 = vxor.u32 %v630, 2147483648
  %v635 = vmul.f32 %v634, 1.442695
  %v636 = vpow.pop %v635
  %v637 = vadd.f32 %v636, 1.0
  %v638 = vrcp.pop %v637
  %v639 = vmul.f32 %v637, %v638
  %v640 = vsub.f32 1.0, %v639
  %v641 = vmul.f32 %v638, %v640
  %v642 = vadd.f32 %v638, %v641
  %vm643 = vweird.f32 %v637
  %vm644 = vweird.f32 %v638
  %vm645 = vmor %vm643, %vm644
  %v646 = vsel %vm645, %v638, %v642
  %v647 = vand.u32 2147483647, %v637
  %vm648 = vcmp.eq.f32.partialorder %v647, 8.507059e+37
  %v649 = vand.u32 %v637, 2147483648
  %v650 = vor.u32 1.1754944e-38, %v649
  %v651 = vsel %vm648, %v650, %v646
  %v652 = vmul.f32 1.0, %v651
  %v653 = vxor.u32 %v631, 2147483648
  %v654 = vmul.f32 %v653, 1.442695
  %v655 = vpow.pop %v654
  %v656 = vadd.f32 %v655, 1.0
  %v657 = vrcp.pop %v656
  %v658 = vmul.f32 %v656, %v657
  %v659 = vsub.f32 1.0, %v658
  %v660 = vmul.f32 %v657, %v659
  %v661 = vadd.f32 %v657, %v660
  %vm662 = vweird.f32 %v656
  %vm663 = vweird.f32 %v657
  %vm664 = vmor %vm662, %vm663
  %v665 = vsel %vm664, %v657, %v661
  %v666 = vand.u32 2147483647, %v656
  %vm667 = vcmp.eq.f32.partialorder %v666, 8.507059e+37
  %v668 = vand.u32 %v656, 2147483648
  %v669 = vor.u32 1.1754944e-38, %v668
  %v670 = vsel %vm667, %v669, %v665
  %v671 = vmul.f32 1.0, %v670
  %v672 = vtanh.pop %v632
  %v673 = vxor.u32 %v633, 2147483648
  %v674 = vmul.f32 %v673, 1.442695
  %v675 = vpow.pop %v674
  %v676 = vadd.f32 %v675, 1.0
  %v677 = vrcp.pop %v676
  %v678 = vmul.f32 %v676, %v677
  %v679 = vsub.f32 1.0, %v678
  %v680 = vmul.f32 %v677, %v679
  %v681 = vadd.f32 %v677, %v680
  %vm682 = vweird.f32 %v676
  %vm683 = vweird.f32 %v677
  %vm684 = vmor %vm682, %vm683
  %v685 = vsel %vm684, %v677, %v681
  %v686 = vand.u32 2147483647, %v676
  %vm687 = vcmp.eq.f32.partialorder %v686, 8.507059e+37
  %v688 = vand.u32 %v676, 2147483648
  %v689 = vor.u32 1.1754944e-38, %v688
  %v690 = vsel %vm687, %v689, %v685
  %v691 = vmul.f32 1.0, %v690
  %v692 = vmul.f32 %v671, %v540
  %v693 = vmul.f32 %v652, %v672
  %v694 = vadd.f32 %v692, %v693
  %v695 = vtanh.pop %v694
  %v696 = vmul.f32 %v691, %v695
  %s697 = scalar_lea.vmem %s2, 24
  %698 = vst [vmem:[%s697] sm:$0xff] %v696
  %s699 = scalar_lea.vmem %s0, 128
  %v700 = vld [vmem:[%s699] sm:$0xff]
  %v701 = vld [vmem:[%s699 + $0x8] sm:$0xff]
  %v702 = vld [vmem:[%s699 + $0x10] sm:$0xff]
  %v703 = vld [vmem:[%s699 + $0x18] sm:$0xff]
  %704 = vmatpush.msra.mxu0 %v79
  %705 = vmatpush.msra.mxu0 %v75
  %706 = vmatpush.msra.mxu0 %v71
  %707 = vmatpush.msra.mxu0 %v67
  %708 = vmatpush.msra.mxu0 %v63
  %709 = vmatpush.msra.mxu0 %v59
  %710 = vmatpush.msra.mxu0 %v55
  %711 = vmatpush.msra.mxu0 %v51
  %712 = vmatpush.msra.mxu0 %v47
  %713 = vmatpush.msra.mxu0 %v43
  %714 = vmatpush.msra.mxu0 %v39
  %715 = vmatpush.msra.mxu0 %v35
  %716 = vmatpush.msra.mxu0 %v31
  %717 = vmatpush.msra.mxu0 %v27
  %718 = vmatpush.msra.mxu0 %v23
  %719 = vmatpush.msra.mxu0 %v19
  %720 = vmatmul.f32.gmra.mxu0 %v696
  %v721 = vpop.f32.mrf.mxu0
  %v722 = vadd.f32 0.0, %v721
  %723 = vdwg.mxu0
  %724 = vmatpush.msra.mxu0 %v80
  %725 = vmatpush.msra.mxu0 %v76
  %726 = vmatpush.msra.mxu0 %v72
  %727 = vmatpush.msra.mxu0 %v68
  %728 = vmatpush.msra.mxu0 %v64
  %729 = vmatpush.msra.mxu0 %v60
  %730 = vmatpush.msra.mxu0 %v56
  %731 = vmatpush.msra.mxu0 %v52
  %732 = vmatpush.msra.mxu0 %v48
  %733 = vmatpush.msra.mxu0 %v44
  %734 = vmatpush.msra.mxu0 %v40
  %735 = vmatpush.msra.mxu0 %v36
  %736 = vmatpush.msra.mxu0 %v32
  %737 = vmatpush.msra.mxu0 %v28
  %738 = vmatpush.msra.mxu0 %v24
  %739 = vmatpush.msra.mxu0 %v20
  %740 = vmatmul.f32.gmra.mxu0 %v696
  %v741 = vpop.f32.mrf.mxu0
  %v742 = vadd.f32 0.0, %v741
  %743 = vdwg.mxu0
  %744 = vmatpush.msra.mxu0 %v81
  %745 = vmatpush.msra.mxu0 %v77
  %746 = vmatpush.msra.mxu0 %v73
  %747 = vmatpush.msra.mxu0 %v69
  %748 = vmatpush.msra.mxu0 %v65
  %749 = vmatpush.msra.mxu0 %v61
  %750 = vmatpush.msra.mxu0 %v57
  %751 = vmatpush.msra.mxu0 %v53
  %752 = vmatpush.msra.mxu0 %v49
  %753 = vmatpush.msra.mxu0 %v45
  %754 = vmatpush.msra.mxu0 %v41
  %755 = vmatpush.msra.mxu0 %v37
  %756 = vmatpush.msra.mxu0 %v33
  %757 = vmatpush.msra.mxu0 %v29
  %758 = vmatpush.msra.mxu0 %v25
  %759 = vmatpush.msra.mxu0 %v21
  %760 = vmatmul.f32.gmra.mxu0 %v696
  %v761 = vpop.f32.mrf.mxu0
  %v762 = vadd.f32 0.0, %v761
  %763 = vdwg.mxu0
  %764 = vmatpush.msra.mxu0 %v82
  %765 = vmatpush.msra.mxu0 %v78
  %766 = vmatpush.msra.mxu0 %v74
  %767 = vmatpush.msra.mxu0 %v70
  %768 = vmatpush.msra.mxu0 %v66
  %769 = vmatpush.msra.mxu0 %v62
  %770 = vmatpush.msra.mxu0 %v58
  %771 = vmatpush.msra.mxu0 %v54
  %772 = vmatpush.msra.mxu0 %v50
  %773 = vmatpush.msra.mxu0 %v46
  %774 = vmatpush.msra.mxu0 %v42
  %775 = vmatpush.msra.mxu0 %v38
  %776 = vmatpush.msra.mxu0 %v34
  %777 = vmatpush.msra.mxu0 %v30
  %778 = vmatpush.msra.mxu0 %v26
  %779 = vmatpush.msra.mxu0 %v22
  %780 = vmatmul.f32.gmra.mxu0 %v696
  %v781 = vpop.f32.mrf.mxu0
  %v782 = vadd.f32 0.0, %v781
  %783 = vdwg.mxu0
  %v784 = vadd.f32 %v700, %v722
  %v785 = vadd.f32 %v701, %v742
  %v786 = vadd.f32 %v702, %v762
  %v787 = vadd.f32 %v703, %v782
  %v788 = vxor.u32 %v784, 2147483648
  %v789 = vmul.f32 %v788, 1.442695
  %v790 = vpow.pop %v789
  %v791 = vadd.f32 %v790, 1.0
  %v792 = vrcp.pop %v791
  %v793 = vmul.f32 %v791, %v792
  %v794 = vsub.f32 1.0, %v793
  %v795 = vmul.f32 %v792, %v794
  %v796 = vadd.f32 %v792, %v795
  %vm797 = vweird.f32 %v791
  %vm798 = vweird.f32 %v792
  %vm799 = vmor %vm797, %vm798
  %v800 = vsel %vm799, %v792, %v796
  %v801 = vand.u32 2147483647, %v791
  %vm802 = vcmp.eq.f32.partialorder %v801, 8.507059e+37
  %v803 = vand.u32 %v791, 2147483648
  %v804 = vor.u32 1.1754944e-38, %v803
  %v805 = vsel %vm802, %v804, %v800
  %v806 = vmul.f32 1.0, %v805
  %v807 = vxor.u32 %v785, 2147483648
  %v808 = vmul.f32 %v807, 1.442695
  %v809 = vpow.pop %v808
  %v810 = vadd.f32 %v809, 1.0
  %v811 = vrcp.pop %v810
  %v812 = vmul.f32 %v810, %v811
  %v813 = vsub.f32 1.0, %v812
  %v814 = vmul.f32 %v811, %v813
  %v815 = vadd.f32 %v811, %v814
  %vm816 = vweird.f32 %v810
  %vm817 = vweird.f32 %v811
  %vm818 = vmor %vm816, %vm817
  %v819 = vsel %vm818, %v811, %v815
  %v820 = vand.u32 2147483647, %v810
  %vm821 = vcmp.eq.f32.partialorder %v820, 8.507059e+37
  %v822 = vand.u32 %v810, 2147483648
  %v823 = vor.u32 1.1754944e-38, %v822
  %v824 = vsel %vm821, %v823, %v819
  %v825 = vmul.f32 1.0, %v824
  %v826 = vtanh.pop %v786
  %v827 = vxor.u32 %v787, 2147483648
  %v828 = vmul.f32 %v827, 1.442695
  %v829 = vpow.pop %v828
  %v830 = vadd.f32 %v829, 1.0
  %v831 = vrcp.pop %v830
  %v832 = vmul.f32 %v830, %v831
  %v833 = vsub.f32 1.0, %v832
  %v834 = vmul.f32 %v831, %v833
  %v835 = vadd.f32 %v831, %v834
  %vm836 = vweird.f32 %v830
  %vm837 = vweird.f32 %v831
  %vm838 = vmor %vm836, %vm837
  %v839 = vsel %vm838, %v831, %v835
  %v840 = vand.u32 2147483647, %v830
  %vm841 = vcmp.eq.f32.partialorder %v840, 8.507059e+37
  %v842 = vand.u32 %v830, 2147483648
  %v843 = vor.u32 1.1754944e-38, %v842
  %v844 = vsel %vm841, %v843, %v839
  %v845 = vmul.f32 1.0, %v844
  %v846 = vmul.f32 %v825, %v694
  %v847 = vmul.f32 %v806, %v826
  %v848 = vadd.f32 %v846, %v847
  %v849 = vtanh.pop %v848
  %v850 = vmul.f32 %v845, %v849
  %s851 = scalar_lea.vmem %s2, 32
  %852 = vst [vmem:[%s851] sm:$0xff] %v850
  %s853 = scalar_lea.vmem %s0, 160
  %v854 = vld [vmem:[%s853] sm:$0xff]
  %v855 = vld [vmem:[%s853 + $0x8] sm:$0xff]
  %v856 = vld [vmem:[%s853 + $0x10] sm:$0xff]
  %v857 = vld [vmem:[%s853 + $0x18] sm:$0xff]
  %858 = vmatpush.msra.mxu0 %v79
  %859 = vmatpush.msra.mxu0 %v75
  %860 = vmatpush.msra.mxu0 %v71
  %861 = vmatpush.msra.mxu0 %v67
  %862 = vmatpush.msra.mxu0 %v63
  %863 = vmatpush.msra.mxu0 %v59
  %864 = vmatpush.msra.mxu0 %v55
  %865 = vmatpush.msra.mxu0 %v51
  %866 = vmatpush.msra.mxu0 %v47
  %867 = vmatpush.msra.mxu0 %v43
  %868 = vmatpush.msra.mxu0 %v39
  %869 = vmatpush.msra.mxu0 %v35
  %870 = vmatpush.msra.mxu0 %v31
  %871 = vmatpush.msra.mxu0 %v27
  %872 = vmatpush.msra.mxu0 %v23
  %873 = vmatpush.msra.mxu0 %v19
  %874 = vmatmul.f32.gmra.mxu0 %v850
  %v875 = vpop.f32.mrf.mxu0
  %v876 = vadd.f32 0.0, %v875
  %877 = vdwg.mxu0
  %878 = vmatpush.msra.mxu0 %v80
  %879 = vmatpush.msra.mxu0 %v76
  %880 = vmatpush.msra.mxu0 %v72
  %881 = vmatpush.msra.mxu0 %v68
  %882 = vmatpush.msra.mxu0 %v64
  %883 = vmatpush.msra.mxu0 %v60
  %884 = vmatpush.msra.mxu0 %v56
  %885 = vmatpush.msra.mxu0 %v52
  %886 = vmatpush.msra.mxu0 %v48
  %887 = vmatpush.msra.mxu0 %v44
  %888 = vmatpush.msra.mxu0 %v40
  %889 = vmatpush.msra.mxu0 %v36
  %890 = vmatpush.msra.mxu0 %v32
  %891 = vmatpush.msra.mxu0 %v28
  %892 = vmatpush.msra.mxu0 %v24
  %893 = vmatpush.msra.mxu0 %v20
  %894 = vmatmul.f32.gmra.mxu0 %v850
  %v895 = vpop.f32.mrf.mxu0
  %v896 = vadd.f32 0.0, %v895
  %897 = vdwg.mxu0
  %898 = vmatpush.msra.mxu0 %v81
  %899 = vmatpush.msra.mxu0 %v77
  %900 = vmatpush.msra.mxu0 %v73
  %901 = vmatpush.msra.mxu0 %v69
  %902 = vmatpush.msra.mxu0 %v65
  %903 = vmatpush.msra.mxu0 %v61
  %904 = vmatpush.msra.mxu0 %v57
  %905 = vmatpush.msra.mxu0 %v53
  %906 = vmatpush.msra.mxu0 %v49
  %907 = vmatpush.msra.mxu0 %v45
  %908 = vmatpush.msra.mxu0 %v41
  %909 = vmatpush.msra.mxu0 %v37
  %910 = vmatpush.msra.mxu0 %v33
  %911 = vmatpush.msra.mxu0 %v29
  %912 = vmatpush.msra.mxu0 %v25
  %913 = vmatpush.msra.mxu0 %v21
  %914 = vmatmul.f32.gmra.mxu0 %v850
  %v915 = vpop.f32.mrf.mxu0
  %v916 = vadd.f32 0.0, %v915
  %917 = vdwg.mxu0
  %918 = vmatpush.msra.mxu0 %v82
  %919 = vmatpush.msra.mxu0 %v78
  %920 = vmatpush.msra.mxu0 %v74
  %921 = vmatpush.msra.mxu0 %v70
  %922 = vmatpush.msra.mxu0 %v66
  %923 = vmatpush.msra.mxu0 %v62
  %924 = vmatpush.msra.mxu0 %v58
  %925 = vmatpush.msra.mxu0 %v54
  %926 = vmatpush.msra.mxu0 %v50
  %927 = vmatpush.msra.mxu0 %v46
  %928 = vmatpush.msra.mxu0 %v42
  %929 = vmatpush.msra.mxu0 %v38
  %930 = vmatpush.msra.mxu0 %v34
  %931 = vmatpush.msra.mxu0 %v30
  %932 = vmatpush.msra.mxu0 %v26
  %933 = vmatpush.msra.mxu0 %v22
  %934 = vmatmul.f32.gmra.mxu0 %v850
  %v935 = vpop.f32.mrf.mxu0
  %v936 = vadd.f32 0.0, %v935
  %937 = vdwg.mxu0
  %v938 = vadd.f32 %v854, %v876
  %v939 = vadd.f32 %v855, %v896
  %v940 = vadd.f32 %v856, %v916
  %v941 = vadd.f32 %v857, %v936
  %v942 = vxor.u32 %v938, 2147483648
  %v943 = vmul.f32 %v942, 1.442695
  %v944 = vpow.pop %v943
  %v945 = vadd.f32 %v944, 1.0
  %v946 = vrcp.pop %v945
  %v947 = vmul.f32 %v945, %v946
  %v948 = vsub.f32 1.0, %v947
  %v949 = vmul.f32 %v946, %v948
  %v950 = vadd.f32 %v946, %v949
  %vm951 = vweird.f32 %v945
  %vm952 = vweird.f32 %v946
  %vm953 = vmor %vm951, %vm952
  %v954 = vsel %vm953, %v946, %v950
  %v955 = vand.u32 2147483647, %v945
  %vm956 = vcmp.eq.f32.partialorder %v955, 8.507059e+37
  %v957 = vand.u32 %v945, 2147483648
  %v958 = vor.u32 1.1754944e-38, %v957
  %v959 = vsel %vm956, %v958, %v954
  %v960 = vmul.f32 1.0, %v959
  %v961 = vxor.u32 %v939, 2147483648
  %v962 = vmul.f32 %v961, 1.442695
  %v963 = vpow.pop %v962
  %v964 = vadd.f32 %v963, 1.0
  %v965 = vrcp.pop %v964
  %v966 = vmul.f32 %v964, %v965
  %v967 = vsub.f32 1.0, %v966
  %v968 = vmul.f32 %v965, %v967
  %v969 = vadd.f32 %v965, %v968
  %vm970 = vweird.f32 %v964
  %vm971 = vweird.f32 %v965
  %vm972 = vmor %vm970, %vm971
  %v973 = vsel %vm972, %v965, %v969
  %v974 = vand.u32 2147483647, %v964
  %vm975 = vcmp.eq.f32.partialorder %v974, 8.507059e+37
  %v976 = vand.u32 %v964, 2147483648
  %v977 = vor.u32 1.1754944e-38, %v976
  %v978 = vsel %vm975, %v977, %v973
  %v979 = vmul.f32 1.0, %v978
  %v980 = vtanh.pop %v940
  %v981 = vxor.u32 %v941, 2147483648
  %v982 = vmul.f32 %v981, 1.442695
  %v983 = vpow.pop %v982
  %v984 = vadd.f32 %v983, 1.0
  %v985 = vrcp.pop %v984
  %v986 = vmul.f32 %v984, %v985
  %v987 = vsub.f32 1.0, %v986
  %v988 = vmul.f32 %v985, %v987
  %v989 = vadd.f32 %v985, %v988
  %vm990 = vweird.f32 %v984
  %vm991 = vweird.f32 %v985
  %vm992 = vmor %vm990, %vm991
  %v993 = vsel %vm992, %v985, %v989
  %v994 = vand.u32 2147483647, %v984
  %vm995 = vcmp.eq.f32.partialorder %v994, 8.507059e+37
  %v996 = vand.u32 %v984, 2147483648
  %v997 = vor.u32 1.1754944e-38, %v996
  %v998 = vsel %vm995, %v997, %v993
  %v999 = vmul.f32 1.0, %v998
  %v1000 = vmul.f32 %v979, %v848
  %v1001 = vmul.f32 %v960, %v980
  %v1002 = vadd.f32 %v1000, %v1001
  %v1003 = vtanh.pop %v1002
  %v1004 = vmul.f32 %v999, %v1003
  %s1005 = scalar_lea.vmem %s2, 40
  %1006 = vst [vmem:[%s1005] sm:$0xff] %v1004
  %s1007 = scalar_lea.vmem %s0, 192
  %v1008 = vld [vmem:[%s1007] sm:$0xff]
  %v1009 = vld [vmem:[%s1007 + $0x8] sm:$0xff]
  %v1010 = vld [vmem:[%s1007 + $0x10] sm:$0xff]
  %v1011 = vld [vmem:[%s1007 + $0x18] sm:$0xff]
  %1012 = vmatpush.msra.mxu0 %v79
  %1013 = vmatpush.msra.mxu0 %v75
  %1014 = vmatpush.msra.mxu0 %v71
  %1015 = vmatpush.msra.mxu0 %v67
  %1016 = vmatpush.msra.mxu0 %v63
  %1017 = vmatpush.msra.mxu0 %v59
  %1018 = vmatpush.msra.mxu0 %v55
  %1019 = vmatpush.msra.mxu0 %v51
  %1020 = vmatpush.msra.mxu0 %v47
  %1021 = vmatpush.msra.mxu0 %v43
  %1022 = vmatpush.msra.mxu0 %v39
  %1023 = vmatpush.msra.mxu0 %v35
  %1024 = vmatpush.msra.mxu0 %v31
  %1025 = vmatpush.msra.mxu0 %v27
  %1026 = vmatpush.msra.mxu0 %v23
  %1027 = vmatpush.msra.mxu0 %v19
  %1028 = vmatmul.f32.gmra.mxu0 %v1004
  %v1029 = vpop.f32.mrf.mxu0
  %v1030 = vadd.f32 0.0, %v1029
  %1031 = vdwg.mxu0
  %1032 = vmatpush.msra.mxu0 %v80
  %1033 = vmatpush.msra.mxu0 %v76
  %1034 = vmatpush.msra.mxu0 %v72
  %1035 = vmatpush.msra.mxu0 %v68
  %1036 = vmatpush.msra.mxu0 %v64
  %1037 = vmatpush.msra.mxu0 %v60
  %1038 = vmatpush.msra.mxu0 %v56
  %1039 = vmatpush.msra.mxu0 %v52
  %1040 = vmatpush.msra.mxu0 %v48
  %1041 = vmatpush.msra.mxu0 %v44
  %1042 = vmatpush.msra.mxu0 %v40
  %1043 = vmatpush.msra.mxu0 %v36
  %1044 = vmatpush.msra.mxu0 %v32
  %1045 = vmatpush.msra.mxu0 %v28
  %1046 = vmatpush.msra.mxu0 %v24
  %1047 = vmatpush.msra.mxu0 %v20
  %1048 = vmatmul.f32.gmra.mxu0 %v1004
  %v1049 = vpop.f32.mrf.mxu0
  %v1050 = vadd.f32 0.0, %v1049
  %1051 = vdwg.mxu0
  %1052 = vmatpush.msra.mxu0 %v81
  %1053 = vmatpush.msra.mxu0 %v77
  %1054 = vmatpush.msra.mxu0 %v73
  %1055 = vmatpush.msra.mxu0 %v69
  %1056 = vmatpush.msra.mxu0 %v65
  %1057 = vmatpush.msra.mxu0 %v61
  %1058 = vmatpush.msra.mxu0 %v57
  %1059 = vmatpush.msra.mxu0 %v53
  %1060 = vmatpush.msra.mxu0 %v49
  %1061 = vmatpush.msra.mxu0 %v45
  %1062 = vmatpush.msra.mxu0 %v41
  %1063 = vmatpush.msra.mxu0 %v37
  %1064 = vmatpush.msra.mxu0 %v33
  %1065 = vmatpush.msra.mxu0 %v29
  %1066 = vmatpush.msra.mxu0 %v25
  %1067 = vmatpush.msra.mxu0 %v21
  %1068 = vmatmul.f32.gmra.mxu0 %v1004
  %v1069 = vpop.f32.mrf.mxu0
  %v1070 = vadd.f32 0.0, %v1069
  %1071 = vdwg.mxu0
  %1072 = vmatpush.msra.mxu0 %v82
  %1073 = vmatpush.msra.mxu0 %v78
  %1074 = vmatpush.msra.mxu0 %v74
  %1075 = vmatpush.msra.mxu0 %v70
  %1076 = vmatpush.msra.mxu0 %v66
  %1077 = vmatpush.msra.mxu0 %v62
  %1078 = vmatpush.msra.mxu0 %v58
  %1079 = vmatpush.msra.mxu0 %v54
  %1080 = vmatpush.msra.mxu0 %v50
  %1081 = vmatpush.msra.mxu0 %v46
  %1082 = vmatpush.msra.mxu0 %v42
  %1083 = vmatpush.msra.mxu0 %v38
  %1084 = vmatpush.msra.mxu0 %v34
  %1085 = vmatpush.msra.mxu0 %v30
  %1086 = vmatpush.msra.mxu0 %v26
  %1087 = vmatpush.msra.mxu0 %v22
  %1088 = vmatmul.f32.gmra.mxu0 %v1004
  %v1089 = vpop.f32.mrf.mxu0
  %v1090 = vadd.f32 0.0, %v1089
  %1091 = vdwg.mxu0
  %v1092 = vadd.f32 %v1008, %v1030
  %v1093 = vadd.f32 %v1009, %v1050
  %v1094 = vadd.f32 %v1010, %v1070
  %v1095 = vadd.f32 %v1011, %v1090
  %v1096 = vxor.u32 %v1092, 2147483648
  %v1097 = vmul.f32 %v1096, 1.442695
  %v1098 = vpow.pop %v1097
  %v1099 = vadd.f32 %v1098, 1.0
  %v1100 = vrcp.pop %v1099
  %v1101 = vmul.f32 %v1099, %v1100
  %v1102 = vsub.f32 1.0, %v1101
  %v1103 = vmul.f32 %v1100, %v1102
  %v1104 = vadd.f32 %v1100, %v1103
  %vm1105 = vweird.f32 %v1099
  %vm1106 = vweird.f32 %v1100
  %vm1107 = vmor %vm1105, %vm1106
  %v1108 = vsel %vm1107, %v1100, %v1104
  %v1109 = vand.u32 2147483647, %v1099
  %vm1110 = vcmp.eq.f32.partialorder %v1109, 8.507059e+37
  %v1111 = vand.u32 %v1099, 2147483648
  %v1112 = vor.u32 1.1754944e-38, %v1111
  %v1113 = vsel %vm1110, %v1112, %v1108
  %v1114 = vmul.f32 1.0, %v1113
  %v1115 = vxor.u32 %v1093, 2147483648
  %v1116 = vmul.f32 %v1115, 1.442695
  %v1117 = vpow.pop %v1116
  %v1118 = vadd.f32 %v1117, 1.0
  %v1119 = vrcp.pop %v1118
  %v1120 = vmul.f32 %v1118, %v1119
  %v1121 = vsub.f32 1.0, %v1120
  %v1122 = vmul.f32 %v1119, %v1121
  %v1123 = vadd.f32 %v1119, %v1122
  %vm1124 = vweird.f32 %v1118
  %vm1125 = vweird.f32 %v1119
  %vm1126 = vmor %vm1124, %vm1125
  %v1127 = vsel %vm1126, %v1119, %v1123
  %v1128 = vand.u32 2147483647, %v1118
  %vm1129 = vcmp.eq.f32.partialorder %v1128, 8.507059e+37
  %v1130 = vand.u32 %v1118, 2147483648
  %v1131 = vor.u32 1.1754944e-38, %v1130
  %v1132 = vsel %vm1129, %v1131, %v1127
  %v1133 = vmul.f32 1.0, %v1132
  %v1134 = vtanh.pop %v1094
  %v1135 = vxor.u32 %v1095, 2147483648
  %v1136 = vmul.f32 %v1135, 1.442695
  %v1137 = vpow.pop %v1136
  %v1138 = vadd.f32 %v1137, 1.0
  %v1139 = vrcp.pop %v1138
  %v1140 = vmul.f32 %v1138, %v1139
  %v1141 = vsub.f32 1.0, %v1140
  %v1142 = vmul.f32 %v1139, %v1141
  %v1143 = vadd.f32 %v1139, %v1142
  %vm1144 = vweird.f32 %v1138
  %vm1145 = vweird.f32 %v1139
  %vm1146 = vmor %vm1144, %vm1145
  %v1147 = vsel %vm1146, %v1139, %v1143
  %v1148 = vand.u32 2147483647, %v1138
  %vm1149 = vcmp.eq.f32.partialorder %v1148, 8.507059e+37
  %v1150 = vand.u32 %v1138, 2147483648
  %v1151 = vor.u32 1.1754944e-38, %v1150
  %v1152 = vsel %vm1149, %v1151, %v1147
  %v1153 = vmul.f32 1.0, %v1152
  %v1154 = vmul.f32 %v1133, %v1002
  %v1155 = vmul.f32 %v1114, %v1134
  %v1156 = vadd.f32 %v1154, %v1155
  %v1157 = vtanh.pop %v1156
  %v1158 = vmul.f32 %v1153, %v1157
  %s1159 = scalar_lea.vmem %s2, 48
  %1160 = vst [vmem:[%s1159] sm:$0xff] %v1158
  %s1161 = scalar_lea.vmem %s0, 224
  %v1162 = vld [vmem:[%s1161] sm:$0xff]
  %v1163 = vld [vmem:[%s1161 + $0x8] sm:$0xff]
  %v1164 = vld [vmem:[%s1161 + $0x10] sm:$0xff]
  %v1165 = vld [vmem:[%s1161 + $0x18] sm:$0xff]
  %1166 = vmatpush.msra.mxu0 %v79
  %1167 = vmatpush.msra.mxu0 %v75
  %1168 = vmatpush.msra.mxu0 %v71
  %1169 = vmatpush.msra.mxu0 %v67
  %1170 = vmatpush.msra.mxu0 %v63
  %1171 = vmatpush.msra.mxu0 %v59
  %1172 = vmatpush.msra.mxu0 %v55
  %1173 = vmatpush.msra.mxu0 %v51
  %1174 = vmatpush.msra.mxu0 %v47
  %1175 = vmatpush.msra.mxu0 %v43
  %1176 = vmatpush.msra.mxu0 %v39
  %1177 = vmatpush.msra.mxu0 %v35
  %1178 = vmatpush.msra.mxu0 %v31
  %1179 = vmatpush.msra.mxu0 %v27
  %1180 = vmatpush.msra.mxu0 %v23
  %1181 = vmatpush.msra.mxu0 %v19
  %1182 = vmatmul.f32.gmra.mxu0 %v1158
  %v1183 = vpop.f32.mrf.mxu0
  %v1184 = vadd.f32 0.0, %v1183
  %1185 = vdwg.mxu0
  %1186 = vmatpush.msra.mxu0 %v80
  %1187 = vmatpush.msra.mxu0 %v76
  %1188 = vmatpush.msra.mxu0 %v72
  %1189 = vmatpush.msra.mxu0 %v68
  %1190 = vmatpush.msra.mxu0 %v64
  %1191 = vmatpush.msra.mxu0 %v60
  %1192 = vmatpush.msra.mxu0 %v56
  %1193 = vmatpush.msra.mxu0 %v52
  %1194 = vmatpush.msra.mxu0 %v48
  %1195 = vmatpush.msra.mxu0 %v44
  %1196 = vmatpush.msra.mxu0 %v40
  %1197 = vmatpush.msra.mxu0 %v36
  %1198 = vmatpush.msra.mxu0 %v32
  %1199 = vmatpush.msra.mxu0 %v28
  %1200 = vmatpush.msra.mxu0 %v24
  %1201 = vmatpush.msra.mxu0 %v20
  %1202 = vmatmul.f32.gmra.mxu0 %v1158
  %v1203 = vpop.f32.mrf.mxu0
  %v1204 = vadd.f32 0.0, %v1203
  %1205 = vdwg.mxu0
  %1206 = vmatpush.msra.mxu0 %v81
  %1207 = vmatpush.msra.mxu0 %v77
  %1208 = vmatpush.msra.mxu0 %v73
  %1209 = vmatpush.msra.mxu0 %v69
  %1210 = vmatpush.msra.mxu0 %v65
  %1211 = vmatpush.msra.mxu0 %v61
  %1212 = vmatpush.msra.mxu0 %v57
  %1213 = vmatpush.msra.mxu0 %v53
  %1214 = vmatpush.msra.mxu0 %v49
  %1215 = vmatpush.msra.mxu0 %v45
  %1216 = vmatpush.msra.mxu0 %v41
  %1217 = vmatpush.msra.mxu0 %v37
  %1218 = vmatpush.msra.mxu0 %v33
  %1219 = vmatpush.msra.mxu0 %v29
  %1220 = vmatpush.msra.mxu0 %v25
  %1221 = vmatpush.msra.mxu0 %v21
  %1222 = vmatmul.f32.gmra.mxu0 %v1158
  %v1223 = vpop.f32.mrf.mxu0
  %v1224 = vadd.f32 0.0, %v1223
  %1225 = vdwg.mxu0
  %1226 = vmatpush.msra.mxu0 %v82
  %1227 = vmatpush.msra.mxu0 %v78
  %1228 = vmatpush.msra.mxu0 %v74
  %1229 = vmatpush.msra.mxu0 %v70
  %1230 = vmatpush.msra.mxu0 %v66
  %1231 = vmatpush.msra.mxu0 %v62
  %1232 = vmatpush.msra.mxu0 %v58
  %1233 = vmatpush.msra.mxu0 %v54
  %1234 = vmatpush.msra.mxu0 %v50
  %1235 = vmatpush.msra.mxu0 %v46
  %1236 = vmatpush.msra.mxu0 %v42
  %1237 = vmatpush.msra.mxu0 %v38
  %1238 = vmatpush.msra.mxu0 %v34
  %1239 = vmatpush.msra.mxu0 %v30
  %1240 = vmatpush.msra.mxu0 %v26
  %1241 = vmatpush.msra.mxu0 %v22
  %1242 = vmatmul.f32.gmra.mxu0 %v1158
  %v1243 = vpop.f32.mrf.mxu0
  %v1244 = vadd.f32 0.0, %v1243
  %1245 = vdwg.mxu0
  %v1246 = vadd.f32 %v1162, %v1184
  %v1247 = vadd.f32 %v1163, %v1204
  %v1248 = vadd.f32 %v1164, %v1224
  %v1249 = vadd.f32 %v1165, %v1244
  %v1250 = vxor.u32 %v1246, 2147483648
  %v1251 = vmul.f32 %v1250, 1.442695
  %v1252 = vpow.pop %v1251
  %v1253 = vadd.f32 %v1252, 1.0
  %v1254 = vrcp.pop %v1253
  %v1255 = vmul.f32 %v1253, %v1254
  %v1256 = vsub.f32 1.0, %v1255
  %v1257 = vmul.f32 %v1254, %v1256
  %v1258 = vadd.f32 %v1254, %v1257
  %vm1259 = vweird.f32 %v1253
  %vm1260 = vweird.f32 %v1254
  %vm1261 = vmor %vm1259, %vm1260
  %v1262 = vsel %vm1261, %v1254, %v1258
  %v1263 = vand.u32 2147483647, %v1253
  %vm1264 = vcmp.eq.f32.partialorder %v1263, 8.507059e+37
  %v1265 = vand.u32 %v1253, 2147483648
  %v1266 = vor.u32 1.1754944e-38, %v1265
  %v1267 = vsel %vm1264, %v1266, %v1262
  %v1268 = vmul.f32 1.0, %v1267
  %v1269 = vxor.u32 %v1247, 2147483648
  %v1270 = vmul.f32 %v1269, 1.442695
  %v1271 = vpow.pop %v1270
  %v1272 = vadd.f32 %v1271, 1.0
  %v1273 = vrcp.pop %v1272
  %v1274 = vmul.f32 %v1272, %v1273
  %v1275 = vsub.f32 1.0, %v1274
  %v1276 = vmul.f32 %v1273, %v1275
  %v1277 = vadd.f32 %v1273, %v1276
  %vm1278 = vweird.f32 %v1272
  %vm1279 = vweird.f32 %v1273
  %vm1280 = vmor %vm1278, %vm1279
  %v1281 = vsel %vm1280, %v1273, %v1277
  %v1282 = vand.u32 2147483647, %v1272
  %vm1283 = vcmp.eq.f32.partialorder %v1282, 8.507059e+37
  %v1284 = vand.u32 %v1272, 2147483648
  %v1285 = vor.u32 1.1754944e-38, %v1284
  %v1286 = vsel %vm1283, %v1285, %v1281
  %v1287 = vmul.f32 1.0, %v1286
  %v1288 = vtanh.pop %v1248
  %v1289 = vxor.u32 %v1249, 2147483648
  %v1290 = vmul.f32 %v1289, 1.442695
  %v1291 = vpow.pop %v1290
  %v1292 = vadd.f32 %v1291, 1.0
  %v1293 = vrcp.pop %v1292
  %v1294 = vmul.f32 %v1292, %v1293
  %v1295 = vsub.f32 1.0, %v1294
  %v1296 = vmul.f32 %v1293, %v1295
  %v1297 = vadd.f32 %v1293, %v1296
  %vm1298 = vweird.f32 %v1292
  %vm1299 = vweird.f32 %v1293
  %vm1300 = vmor %vm1298, %vm1299
  %v1301 = vsel %vm1300, %v1293, %v1297
  %v1302 = vand.u32 2147483647, %v1292
  %vm1303 = vcmp.eq.f32.partialorder %v1302, 8.507059e+37
  %v1304 = vand.u32 %v1292, 2147483648
  %v1305 = vor.u32 1.1754944e-38, %v1304
  %v1306 = vsel %vm1303, %v1305, %v1301
  %v1307 = vmul.f32 1.0, %v1306
  %v1308 = vmul.f32 %v1287, %v1156
  %v1309 = vmul.f32 %v1268, %v1288
  %v1310 = vadd.f32 %v1308, %v1309
  %v1311 = vtanh.pop %v1310
  %v1312 = vmul.f32 %v1307, %v1311
  %s1313 = scalar_lea.vmem %s2, 56
  %1314 = vst [vmem:[%s1313] sm:$0xff] %v1312
  %1315 = vst [vmem:[#allocation2] sm:$0xff] %v1312
  %1316 = vst [vmem:[#allocation3] sm:$0xff] %v1310
  %1317 = vst [vmem:[%s3] sm:$0xff] %v1312
  // Predicated region
  $region14: #{lstm_forward.1} parent=0 // pred_check
    _
  $region15: #{lstm_forward.1} parent=0 // pred_check_branch
    %1319 = sbr.rel (0) target = $region17
  $region16: #{lstm_forward.1} parent=0 // pred_region
    _
  $region17: #{lstm_forward.1} parent=0 // pred_fallthru
    _
  // Predicated region
  $region18: #{lstm_forward.1} parent=0 // pred_check
    _
  $region19: #{lstm_forward.1} parent=0 // pred_check_branch
    %1321 = sbr.rel (0) target = $region21
  $region20: #{lstm_forward.1} parent=0 // pred_region
    _
  $region21: #{lstm_forward.1} parent=0 // pred_fallthru
    _
  // Predicated region
  $region22: #{lstm_forward.1} parent=0 // pred_check
    _
  $region23: #{lstm_forward.1} parent=0 // pred_check_branch
    %1323 = sbr.rel (0) target = $region25
  $region24: #{lstm_forward.1} parent=0 // pred_region
    _
  $region25: #{lstm_forward.1} parent=0 // pred_fallthru
    _
  // Predicated region
  $region26: #{lstm_forward.1} parent=0 // pred_check
    _
  $region27: #{lstm_forward.1} parent=0 // pred_check_branch
    %1325 = sbr.rel (0) target = $region29
  $region28: #{lstm_forward.1} parent=0 // pred_region
    _
  $region29: #{lstm_forward.1} parent=0 // pred_fallthru
    _

</llo_original>
